<compile_context>
chip_gen: v7x
topology: tpu7x:2x2x1
jax: 0.10.0
libtpu: 0.0.40
codegen_flags: <defaults>
</compile_context>

<pallas_src>
import jax
import jax.numpy as jnp
import numpy as np
from jax.experimental import pallas as pl
from jax.experimental.pallas import tpu as pltpu


def _round_up(v: int, m: int) -> int:
    return ((v + m - 1) // m) * m


def air_gcnii_kernel(a_ref, xn_ref, x0_ref, norm_ref, wg_ref, weff_ref, bg_ref,
                     o_ref, acc_ref):
    """One (dst-row tile i, src tile k) grid step of the AIR-GCNII forward."""
    k = pl.program_id(1)

    @pl.when(k == 0)
    def _init():
        acc_ref[...] = jnp.zeros_like(acc_ref)

    # Message passing: A[i, k] @ (norm * x)[k].
    # A is streamed as int8 (exact 0/1 -> 1 byte/elem on the dominant N^2 HBM
    # stream) and cast to the MXU feed dtype here; accumulation stays in f32.
    a = a_ref[...].astype(xn_ref.dtype)
    acc_ref[...] += jnp.dot(a, xn_ref[...], preferred_element_type=jnp.float32)

    @pl.when(k == pl.num_programs(1) - 1)
    def _epilogue():
        x0 = x0_ref[...].astype(jnp.float32)
        h = acc_ref[...] * norm_ref[...]                      # dst-side D^{-1/2}

        # gate_alpha_layer: z = sigmoid([h || x0] @ Wg + bg), one scalar per node.
        # Done as VPU multiply + XLU row reduce (no width-1 MXU matmul).
        gate = jnp.sum(h * wg_ref[0:1, :] + x0 * wg_ref[1:2, :],
                       axis=-1, keepdims=True) + bg_ref[0, 0]
        z = jax.nn.sigmoid(gate)
        h = z * h + (1.0 - z) * x0

        # GCNII identity mapping folded into one weight:
        #   (1-beta)*h + beta*(h @ W^T)  ==  h @ ((1-beta)*I + beta*W^T)
        h = jnp.dot(h, weff_ref[...], preferred_element_type=jnp.float32)

        # activation = ReLU
        o_ref[...] = jnp.maximum(h, 0.0).astype(o_ref.dtype)


def air_gcnii_layer(adj, x, x0, wg, bg, wlin, *, beta: float,
                    tm: int = 512, tk: int = 512, mxu_bf16: bool = False):
    """AIR-GCNII layer forward.

    adj : (N, N) dense 0/1 adjacency, adj[v, u] = 1 for edge u -> v.
    x   : (N, D) current features.   x0 : (N, D) initial features.
    wg  : (2D, 1) gate Linear weight for [h || x0].   bg : (1, 1) gate bias.
    wlin: (D, D) linear weight stored transposed, i.e. the layer uses h @ wlin.
    """
    n, d = x.shape
    assert adj.shape == (n, n) and x0.shape == (n, d)
    assert wg.shape == (2 * d, 1) and wlin.shape == (d, d)

    # ---- host-side (XLA) prep: O(N*D) / O(D^2), cheap relative to A traffic ----
    adj = adj.astype(jnp.float32)
    degs = jnp.maximum(jnp.sum(adj, axis=1, keepdims=True), 1.0)      # in-degree
    norm = jax.lax.rsqrt(degs)                                        # (N, 1)
    xn = (x.astype(jnp.float32) * norm)                               # src-side scaling
    if mxu_bf16:
        xn = xn.astype(jnp.bfloat16)   # full bf16 MXU feed + half the xn bytes
    a8 = adj.astype(jnp.int8)          # 0/1 is exact in int8; 1 byte/elem in HBM
    weff = ((1.0 - beta) * jnp.eye(d, dtype=jnp.float32)
            + beta * wlin.astype(jnp.float32))                        # (D, D)
    wg2 = jnp.concatenate([wg[:d, :].T, wg[d:, :].T], axis=0)         # (2, D) lane-dense
    bg = bg.reshape(1, 1).astype(jnp.float32)

    # ---- pad feature dim to a lane-dense multiple of 128 ----------------------
    dp = _round_up(d, 128)
    if dp != d:
        xn = jnp.pad(xn, ((0, 0), (0, dp - d)))
        x0 = jnp.pad(x0.astype(jnp.float32), ((0, 0), (0, dp - d)))
        wg2 = jnp.pad(wg2, ((0, 0), (0, dp - d)))
        weff = jnp.pad(weff, ((0, dp - d), (0, dp - d)))
    wg2 = jnp.pad(wg2, ((0, 6), (0, 0)))                              # sublane-align to 8

    # ---- pad N so row tiles (tm) and src tiles (tk) divide evenly -------------
    tm = min(tm, _round_up(n, 32))     # 32: int8 sublane-tile alignment for A rows
    tk = min(tk, _round_up(n, 128))
    assert tm % 32 == 0 and tk % 128 == 0
    nr = _round_up(n, tm)              # padded destination (row) count
    nc = _round_up(n, tk)              # padded source (col) count
    a8 = jnp.pad(a8, ((0, nr - n), (0, nc - n)))
    xn = jnp.pad(xn, ((0, nc - n), (0, 0)))
    x0p = jnp.pad(x0.astype(jnp.float32), ((0, nr - n), (0, 0)))
    normp = jnp.pad(norm, ((0, nr - n), (0, 0)), constant_values=1.0)

    grid = (nr // tm, nc // tk)
    a_bytes = int(nr * nc * a8.dtype.itemsize)
    x_bytes = int(grid[0] * nc * dp * xn.dtype.itemsize)   # xn re-read per row tile
    io_bytes = int(3 * nr * dp * 4 + 2 * nr * 4 + 2 * dp * dp * 4)

    out = pl.pallas_call(
        air_gcnii_kernel,
        out_shape=jax.ShapeDtypeStruct((nr, dp), jnp.float32),
        grid_spec=pltpu.PrefetchScalarGridSpec(
            num_scalar_prefetch=0,
            grid=grid,
            in_specs=[
                pl.BlockSpec((tm, tk), lambda i, k: (i, k)),         # A tile (int8)
                pl.BlockSpec((tk, dp), lambda i, k: (k, 0)),         # norm * x
                pl.BlockSpec((tm, dp), lambda i, k: (i, 0)),         # x0 (epilogue)
                pl.BlockSpec((tm, 1), lambda i, k: (i, 0)),          # dst norm
                pl.BlockSpec((8, dp), lambda i, k: (0, 0)),          # gate weights (resident)
                pl.BlockSpec((dp, dp), lambda i, k: (0, 0)),         # W_eff (resident)
                pl.BlockSpec(memory_space=pltpu.MemorySpace.SMEM),   # gate bias scalar
            ],
            out_specs=pl.BlockSpec((tm, dp), lambda i, k: (i, 0)),
            scratch_shapes=[pltpu.VMEM((tm, dp), jnp.float32)],      # f32 accumulator
        ),
        compiler_params=pltpu.CompilerParams(
            dimension_semantics=("parallel", "arbitrary")),
        cost_estimate=pl.CostEstimate(
            flops=int(2 * nr * nc * dp + 2 * nr * dp * dp + 8 * nr * dp),
            transcendentals=int(nr),
            bytes_accessed=a_bytes + x_bytes + io_bytes),
    )(a8, xn, x0p, normp, wg2, weff, bg)
    return out[:n, :d]


def reference(adj, x, x0, wg, bg, wlin, *, beta):
    degs = jnp.maximum(jnp.sum(adj, axis=1, keepdims=True), 1.0)
    norm = degs ** -0.5
    h = norm * (adj @ (x * norm))
    z = jax.nn.sigmoid(jnp.concatenate([h, x0], axis=1) @ wg + bg[0, 0])
    h = z * h + (1.0 - z) * x0
    h = (1.0 - beta) * h + beta * (h @ wlin)
    return jnp.maximum(h, 0.0)


if __name__ == "__main__":
    N, D = 500, 128        # N nodes, in_dim == out_dim == D (GCNII-style layer)
    beta = 0.5

    key = jax.random.PRNGKey(0)
    k_adj, k_x, k_x0, k_wlin, k_wg, k_bg = jax.random.split(key, 6)

    # Deterministic synthetic graph: dense 0/1 adjacency (dst, src) + self loops.
    adj = jax.random.bernoulli(k_adj, p=0.05, shape=(N, N)).astype(jnp.float32)
    adj = jnp.maximum(adj, jnp.eye(N, dtype=jnp.float32))

    x = jax.random.normal(k_x, (N, D), dtype=jnp.float32)
    x0 = jax.random.normal(k_x0, (N, D), dtype=jnp.float32)

    # linear.weight: xavier_uniform with gain for ReLU (cal_gain(relu) = sqrt(2)),
    # stored transposed as (D_in, D_out) so the layer computes h @ W^T directly.
    gain = float(np.sqrt(2.0))
    bound_lin = gain * float(np.sqrt(6.0 / (D + D)))
    wlin = jax.random.uniform(k_wlin, (D, D), jnp.float32, -bound_lin, bound_lin)

    # gate_alpha_layer: Linear(2D -> 1) default-style init (deterministic uniform).
    bound_g = 1.0 / float(np.sqrt(2 * D))
    wg = jax.random.uniform(k_wg, (2 * D, 1), jnp.float32, -bound_g, bound_g)
    bg = jax.random.uniform(k_bg, (1, 1), jnp.float32, -bound_g, bound_g)

    ref = jax.block_until_ready(reference(adj, x, x0, wg, bg, wlin, beta=beta))

    # Small tiles: a 4x2 grid exercises accumulation over src tiles + padding.
    out = air_gcnii_layer(adj, x, x0, wg, bg, wlin, beta=beta, tm=128, tk=256)
    out = jax.block_until_ready(out)
    np.testing.assert_allclose(np.asarray(out), np.asarray(ref), rtol=1e-4, atol=1e-5)

    # Default (large) tiles: single-tile path with tile capping to the graph size.
    out2 = air_gcnii_layer(adj, x, x0, wg, bg, wlin, beta=beta)
    out2 = jax.block_until_ready(out2)
    np.testing.assert_allclose(np.asarray(out2), np.asarray(ref), rtol=1e-4, atol=1e-5)

    print("KERNEL_OK")
</pallas_src>

<mosaic_0001>
module attributes {stable_mosaic.version = 11 : i64} {
  func.func @air_gcnii_kernel(%arg0: i32, %arg1: i32, %arg2: memref<128x256xi8, #tpu.memory_space<vmem>>, %arg3: memref<256x128xf32, #tpu.memory_space<vmem>>, %arg4: memref<128x128xf32, #tpu.memory_space<vmem>>, %arg5: memref<128x1xf32, #tpu.memory_space<vmem>>, %arg6: memref<8x128xf32, #tpu.memory_space<vmem>>, %arg7: memref<128x128xf32, #tpu.memory_space<vmem>>, %arg8: memref<1x1xf32, #tpu.memory_space<smem>>, %arg9: memref<128x128xf32, #tpu.memory_space<vmem>>, %arg10: memref<128x128xf32, #tpu.memory_space<vmem>>) attributes {dimension_semantics = [#tpu.dimension_semantics<parallel>, #tpu.dimension_semantics<arbitrary>], iteration_bounds = array<i64: 4, 2>, scalar_prefetch = 0 : i64, scratch_operands = 1 : i64, tpu.core_type = #tpu.core_type<tc>, window_params = [{transform_indices = @transform_0, window_bounds = array<i64: 128, 256>}, {transform_indices = @transform_1, window_bounds = array<i64: 256, 128>}, {transform_indices = @transform_2, window_bounds = array<i64: 128, 128>}, {transform_indices = @transform_3, window_bounds = array<i64: 128, 1>}, {pipeline_mode = #tpu.pipeline_mode<synchronous>, transform_indices = @transform_4, window_bounds = array<i64: 8, 128>}, {pipeline_mode = #tpu.pipeline_mode<synchronous>, transform_indices = @transform_5, window_bounds = array<i64: 128, 128>}, {transform_indices = @transform_6, window_bounds = array<i64: 1, 1>}, {transform_indices = @transform_7, window_bounds = array<i64: 128, 128>}]} {
    %c0_i32 = arith.constant 0 : i32
    %0 = arith.cmpi eq, %arg1, %c0_i32 : i32
    %1 = arith.extui %0 : i1 to i32
    %c0_i32_0 = arith.constant 0 : i32
    %2 = arith.cmpi ne, %1, %c0_i32_0 : i32
    scf.if %2 {
      %cst_9 = arith.constant 0.000000e+00 : f32
      %13 = vector.broadcast %cst_9 : f32 to vector<128x128xf32>
      %c0_10 = arith.constant 0 : index
      %c0_11 = arith.constant 0 : index
      %14 = vector.load %arg10[%c0_10, %c0_11] : memref<128x128xf32, #tpu.memory_space<vmem>>, vector<128x128xf32>
      tpu.vector_store %arg10[%c0_10, %c0_11], %13 {strides = array<i32>} : memref<128x128xf32, #tpu.memory_space<vmem>>, vector<128x128xf32>,
    } else {
    }
    %c0 = arith.constant 0 : index
    %c0_1 = arith.constant 0 : index
    %3 = vector.load %arg2[%c0, %c0_1] : memref<128x256xi8, #tpu.memory_space<vmem>>, vector<128x256xi8>
    %4 = arith.sitofp %3 : vector<128x256xi8> to vector<128x256xf32>
    %c0_2 = arith.constant 0 : index
    %c0_3 = arith.constant 0 : index
    %5 = vector.load %arg10[%c0_2, %c0_3] : memref<128x128xf32, #tpu.memory_space<vmem>>, vector<128x128xf32>
    %c0_4 = arith.constant 0 : index
    %c0_5 = arith.constant 0 : index
    %6 = vector.load %arg3[%c0_4, %c0_5] : memref<256x128xf32, #tpu.memory_space<vmem>>, vector<256x128xf32>
    %cst = arith.constant dense<0.000000e+00> : vector<128x128xf32>
    %7 = tpu.matmul %4, %6, %cst {dimension_numbers = #tpu.dot_dimension_numbers<[1], [0], [0], [1], [0, 0, 1, 1], [], []>} : vector<128x256xf32>, vector<256x128xf32>, vector<128x128xf32> -> vector<128x128xf32>
    %8 = arith.addf %5, %7 : vector<128x128xf32>
    %c0_6 = arith.constant 0 : index
    %c0_7 = arith.constant 0 : index
    %9 = vector.load %arg10[%c0_6, %c0_7] : memref<128x128xf32, #tpu.memory_space<vmem>>, vector<128x128xf32>
    tpu.vector_store %arg10[%c0_6, %c0_7], %8 {strides = array<i32>} : memref<128x128xf32, #tpu.memory_space<vmem>>, vector<128x128xf32>,
    %c1_i32 = arith.constant 1 : i32
    %10 = arith.cmpi eq, %arg1, %c1_i32 : i32
    %11 = arith.extui %10 : i1 to i32
    %c0_i32_8 = arith.constant 0 : i32
    %12 = arith.cmpi ne, %11, %c0_i32_8 : i32
    scf.if %12 {
      %c0_9 = arith.constant 0 : index
      %c0_10 = arith.constant 0 : index
      %13 = vector.load %arg4[%c0_9, %c0_10] : memref<128x128xf32, #tpu.memory_space<vmem>>, vector<128x128xf32>
      %c0_11 = arith.constant 0 : index
      %c0_12 = arith.constant 0 : index
      %14 = vector.load %arg10[%c0_11, %c0_12] : memref<128x128xf32, #tpu.memory_space<vmem>>, vector<128x128xf32>
      %c0_13 = arith.constant 0 : index
      %c0_14 = arith.constant 0 : index
      %15 = vector.load %arg5[%c0_13, %c0_14] : memref<128x1xf32, #tpu.memory_space<vmem>>, vector<128x1xf32>
      %16 = vector.broadcast %15 : vector<128x1xf32> to vector<128x128xf32>
      %17 = arith.mulf %14, %16 : vector<128x128xf32>
      %c0_15 = arith.constant 0 : index
      %c0_16 = arith.constant 0 : index
      %18 = vector.load %arg6[%c0_15, %c0_16] : memref<8x128xf32, #tpu.memory_space<vmem>>, vector<1x128xf32>
      %19 = vector.broadcast %18 : vector<1x128xf32> to vector<128x128xf32>
      %20 = arith.mulf %17, %19 : vector<128x128xf32>
      %c1 = arith.constant 1 : index
      %c0_17 = arith.constant 0 : index
      %21 = vector.load %arg6[%c1, %c0_17] : memref<8x128xf32, #tpu.memory_space<vmem>>, vector<1x128xf32>
      %22 = vector.broadcast %21 : vector<1x128xf32> to vector<128x128xf32>
      %23 = arith.mulf %13, %22 : vector<128x128xf32>
      %24 = arith.addf %20, %23 : vector<128x128xf32>
      %cst_18 = arith.constant dense<0.000000e+00> : vector<128xf32>
      %25 = vector.multi_reduction <add>, %24, %cst_18 [1] : vector<128x128xf32> to vector<128xf32>
      %26 = vector.shape_cast %25 : vector<128xf32> to vector<128x1xf32>
      %c0_19 = arith.constant 0 : index
      %c0_20 = arith.constant 0 : index
      %27 = memref.load %arg8[%c0_19, %c0_20] : memref<1x1xf32, #tpu.memory_space<smem>>
      %28 = vector.broadcast %27 : f32 to vector<128x1xf32>
      %29 = arith.addf %26, %28 : vector<128x1xf32>
      %30 = arith.negf %29 : vector<128x1xf32>
      %31 = math.exp %30 : vector<128x1xf32>
      %cst_21 = arith.constant 1.000000e+00 : f32
      %32 = vector.broadcast %cst_21 : f32 to vector<128x1xf32>
      %33 = arith.addf %32, %31 : vector<128x1xf32>
      %34 = arith.divf %32, %33 : vector<128x1xf32>
      %35 = vector.broadcast %34 : vector<128x1xf32> to vector<128x128xf32>
      %36 = arith.mulf %35, %17 : vector<128x128xf32>
      %cst_22 = arith.constant 1.000000e+00 : f32
      %37 = vector.broadcast %cst_22 : f32 to vector<128x1xf32>
      %38 = arith.subf %37, %34 : vector<128x1xf32>
      %39 = vector.broadcast %38 : vector<128x1xf32> to vector<128x128xf32>
      %40 = arith.mulf %39, %13 : vector<128x128xf32>
      %41 = arith.addf %36, %40 : vector<128x128xf32>
      %c0_23 = arith.constant 0 : index
      %c0_24 = arith.constant 0 : index
      %42 = vector.load %arg7[%c0_23, %c0_24] : memref<128x128xf32, #tpu.memory_space<vmem>>, vector<128x128xf32>
      %cst_25 = arith.constant dense<0.000000e+00> : vector<128x128xf32>
      %43 = tpu.matmul %41, %42, %cst_25 {dimension_numbers = #tpu.dot_dimension_numbers<[1], [0], [0], [1], [0, 0, 1, 1], [], []>} : vector<128x128xf32>, vector<128x128xf32>, vector<128x128xf32> -> vector<128x128xf32>
      %cst_26 = arith.constant 0.000000e+00 : f32
      %44 = vector.broadcast %cst_26 : f32 to vector<128x128xf32>
      %45 = arith.maximumf %43, %44 : vector<128x128xf32>
      %c0_27 = arith.constant 0 : index
      %c0_28 = arith.constant 0 : index
      %46 = vector.load %arg9[%c0_27, %c0_28] : memref<128x128xf32, #tpu.memory_space<vmem>>, vector<128x128xf32>
      tpu.vector_store %arg9[%c0_27, %c0_28], %45 {strides = array<i32>} : memref<128x128xf32, #tpu.memory_space<vmem>>, vector<128x128xf32>,
    } else {
    }
    return
  }
  func.func @transform_0(%arg0: i32, %arg1: i32) -> (i32, i32) {
    %c0_i32 = arith.constant 0 : i32
    return %arg0, %arg1 : i32, i32
  }
  func.func @transform_1(%arg0: i32, %arg1: i32) -> (i32, i32) {
    %c0_i32 = arith.constant 0 : i32
    %c0_i32_0 = arith.constant 0 : i32
    return %arg1, %c0_i32 : i32, i32
  }
  func.func @transform_2(%arg0: i32, %arg1: i32) -> (i32, i32) {
    %c0_i32 = arith.constant 0 : i32
    %c0_i32_0 = arith.constant 0 : i32
    return %arg0, %c0_i32 : i32, i32
  }
  func.func @transform_3(%arg0: i32, %arg1: i32) -> (i32, i32) {
    %c0_i32 = arith.constant 0 : i32
    %c0_i32_0 = arith.constant 0 : i32
    return %arg0, %c0_i32 : i32, i32
  }
  func.func @transform_4(%arg0: i32, %arg1: i32) -> (i32, i32) {
    %c0_i32 = arith.constant 0 : i32
    %c0_i32_0 = arith.constant 0 : i32
    %c0_i32_1 = arith.constant 0 : i32
    return %c0_i32, %c0_i32_0 : i32, i32
  }
  func.func @transform_5(%arg0: i32, %arg1: i32) -> (i32, i32) {
    %c0_i32 = arith.constant 0 : i32
    %c0_i32_0 = arith.constant 0 : i32
    %c0_i32_1 = arith.constant 0 : i32
    return %c0_i32, %c0_i32_0 : i32, i32
  }
  func.func @transform_6(%arg0: i32, %arg1: i32) -> (i32, i32) {
    %c0_i32 = arith.constant 0 : i32
    %c0_i32_0 = arith.constant 0 : i32
    %c0_i32_1 = arith.constant 0 : i32
    return %c0_i32, %c0_i32_0 : i32, i32
  }
  func.func @transform_7(%arg0: i32, %arg1: i32) -> (i32, i32) {
    %c0_i32 = arith.constant 0 : i32
    %c0_i32_0 = arith.constant 0 : i32
    return %arg0, %c0_i32 : i32, i32
  }
}

</mosaic_0001>

<llo_original>
// kernel: tpu_custom_call.1
$region0: #{tpu_custom_call.1}
  #allocation0 [shape = 'u32[]', space=smem, size = 0x4, offset = 0x4, fixed_abs, tag = 'smem constant byte address 0x4 - core index']
  #allocation1 [shape = 'u32[144,128]{1,0:T(1,128)}', space=vmem, size = 0x12000, scoped, tag = 'internal scratch']
  #allocation2 [shape = 'f32[128,128]{1,0:T(8,128)}', space=vmem, size = 0x10000, scoped, tag = 'scratch operand']
  #allocation3 [shape = 'f32[1,1]{1,0:T(1,128)S(6)}', space=smem, size = 0x200, scoped, tag = 'scoped memory for tpu_custom_call.1']
  %s0 = inlined_call_operand.vmem [shape: s8[512,512], index: 0, kind: input, shape index: {}]
  %s1 = inlined_call_operand.hbm [shape: f32[512,128], index: 1, kind: input, shape index: {}]
  %s2 = inlined_call_operand.hbm [shape: f32[512,128], index: 2, kind: input, shape index: {}]
  %s3 = inlined_call_operand.vmem [shape: f32[512,1], index: 3, kind: input, shape index: {}]
  %s4 = inlined_call_operand.vmem [shape: f32[8,128], index: 4, kind: input, shape index: {}]
  %s5 = inlined_call_operand.hbm [shape: f32[128,128], index: 5, kind: input, shape index: {}]
  %s6 = inlined_call_operand.<no memory space> [shape: f32[1,1], index: 6, kind: input, shape index: {}]
  %s7 = inlined_call_operand.hbm [shape: f32[512,128], index: 7, kind: output, shape index: {}]
  %s8 = sld [smem:[#allocation0]]
  $region104: #{tpu_custom_call.1} parent=0
    _
  %s10 = ssub.s32 1, %s8
  %s11 = scalar_select 0, %s10, %s8
  %12 = sst [smem:[#allocation3]] %s6
  $region1: #{tpu_custom_call.1} parent=0
    #allocation4 [shape = 'u8[65536]{0}', space=vmem, size = 0x10000, scoped, tag = 'input window, operand 0']
    #allocation5 [shape = 'u8[262144]{0}', space=vmem, size = 0x40000, scoped, tag = 'input window, operand 1']
    #allocation6 [shape = 's32[2]{0}', space=sflag, size = 0x8, scoped, tag = 'scoped memory for tpu_custom_call.1']
    #allocation7 [shape = 's32[2]{0}', space=sflag, size = 0x8, scoped, tag = 'scoped memory for tpu_custom_call.1']
    #allocation8 [shape = 'u8[131072]{0}', space=vmem, size = 0x20000, scoped, tag = 'input window, operand 2']
    #allocation9 [shape = 's32[2]{0}', space=sflag, size = 0x8, scoped, tag = 'scoped memory for tpu_custom_call.1']
    #allocation10 [shape = 'u8[65536]{0}', space=vmem, size = 0x10000, scoped, tag = 'input window, operand 5, single buffered']
    #allocation11 [shape = 'u8[131072]{0}', space=vmem, size = 0x20000, scoped, tag = 'output window, operand 0']
    %13 = vsyncpa [#allocation6], 0
    %s14 = scalar_lea.sflag [#allocation6], 1
    %15 = vsyncpa %s14, 0
    %16 = vsyncpa [#allocation9], 0
    %s17 = scalar_lea.sflag [#allocation9], 1
    %18 = vsyncpa %s17, 0
    %19 = vsyncpa [#allocation7], 0
    %s20 = scalar_lea.sflag [#allocation7], 1
    %21 = vsyncpa %s20, 0
    loop: start=0, step=1, limit=10
    $region2: #{tpu_custom_call.1} parent=1 // loop_pre_header
      _
    $region3: #{tpu_custom_call.1} parent=1 // loop_header
      %s23 = sphi 0, %s27
      %p24 = scmp.ge.s32.totalorder %s23, 10
      %s30 = sphi 0, %s42
      %s31 = sphi 0, %s38
      %s32 = sphi 0, %s30
      %s33 = sphi 0, %s31
      %s34 = sphi 0, %s32
      %s35 = sphi 0, %s33
      %s47 = sphi 0, %s49
      %s50 = sphi 0, %s47
      %s51 = sphi 0, %s50
      %s67 = sphi 0, %s51
      %s73 = sphi 0, %s75
      %s76 = sphi 0, %s73
      %s77 = sphi 0, %s76
      %s93 = sphi 0, %s77
      %s99 = sphi 0, %s101
      %s102 = sphi 0, %s99
      %s103 = sphi 0, %s102
      %s119 = sphi 0, %s103
      %s125 = sphi 0, %s127
      %s128 = sphi 0, %s125
      %s129 = sphi 0, %s128
      %s145 = sphi 0, %s129
      %s149 = sphi 0, %s149
      %s151 = sphi 0, %s149
      %s152 = sphi 0, %s151
      %s166 = sphi 0, %s152
      %s170 = sphi 0, %s170
      %s172 = sphi 0, %s170
      %s173 = sphi 0, %s172
      %s187 = sphi 0, %s173
      %s191 = sphi 0, %s191
      %s193 = sphi 0, %s191
      %s194 = sphi 0, %s193
      %s208 = sphi 0, %s194
      %s214 = sphi 0, %s216
      %s217 = sphi 0, %s214
      %s218 = sphi 0, %s217
      %s234 = sphi 0, %s218
    $region4: #{tpu_custom_call.1} parent=1 // loop_header_branch
      %26 = sbr.rel (%p24) target = $region8
    $region5: #{tpu_custom_call.1} parent=1 // loop_body
      %s28 = ssub.s32 %s23, 1
      %s29 = ssub.s32 %s23, 2
      %s36 = sadd.s32 1, %s31
      %p37 = scmp.ge.s32.totalorder %s36, 2
      %s38 = scalar_select %p37, 0, %s36
      %s39 = sadd.s32 1, %s30
      %s40 = scalar_select %p37, %s39, %s30
      %p41 = scmp.ge.s32.totalorder %s40, 4
      %s42 = scalar_select %p41, 0, %s40
      %s43 = ssub.s32 %s30, %s42
      %s44 = ssub.s32 %s31, %s38
      %s45 = sor.u32 %s43, %s44
      %p46 = scmp.eq.s32.totalorder %s45, 0
      %s48 = sadd.s32 %s47, 1
      %s49 = scalar_select %p46, %s47, %s48
      %p52 = pneg %p46
      %p53 = scmp.eq.s32.totalorder %s23, 7
      %p54 = por %p52, %p53
      %p55 = scmp.ne.s32.totalorder %s47, %s50
      %p56 = scmp.eq.s32.totalorder %s23, 0
      %p57 = por %p55, %p56
      %p58 = scmp.ne.s32.totalorder %s47, %s50
      %p59 = scmp.eq.s32.totalorder %s28, 7
      %p60 = por %p58, %p59
      %p61 = scmp.ne.s32.totalorder %s50, %s51
      %p62 = scmp.eq.s32.totalorder %s28, 0
      %p63 = por %p61, %p62
      %p64 = scmp.ne.s32.totalorder %s50, %s51
      %p65 = scmp.eq.s32.totalorder %s29, 7
      %p66 = por %p64, %p65
      %p68 = scmp.ne.s32.totalorder %s51, %s67
      %p69 = scmp.eq.s32.totalorder %s29, 0
      %p70 = por %p68, %p69
      %s71 = ssub.s32 %s31, %s38
      %p72 = scmp.eq.s32.totalorder %s71, 0
      %s74 = sadd.s32 %s73, 1
      %s75 = scalar_select %p72, %s73, %s74
      %p78 = pneg %p72
      %p79 = scmp.eq.s32.totalorder %s23, 7
      %p80 = por %p78, %p79
      %p81 = scmp.ne.s32.totalorder %s73, %s76
      %p82 = scmp.eq.s32.totalorder %s23, 0
      %p83 = por %p81, %p82
      %p84 = scmp.ne.s32.totalorder %s73, %s76
      %p85 = scmp.eq.s32.totalorder %s28, 7
      %p86 = por %p84, %p85
      %p87 = scmp.ne.s32.totalorder %s76, %s77
      %p88 = scmp.eq.s32.totalorder %s28, 0
      %p89 = por %p87, %p88
      %p90 = scmp.ne.s32.totalorder %s76, %s77
      %p91 = scmp.eq.s32.totalorder %s29, 7
      %p92 = por %p90, %p91
      %p94 = scmp.ne.s32.totalorder %s77, %s93
      %p95 = scmp.eq.s32.totalorder %s29, 0
      %p96 = por %p94, %p95
      %s97 = ssub.s32 %s30, %s42
      %p98 = scmp.eq.s32.totalorder %s97, 0
      %s100 = sadd.s32 %s99, 1
      %s101 = scalar_select %p98, %s99, %s100
      %p104 = pneg %p98
      %p105 = scmp.eq.s32.totalorder %s23, 7
      %p106 = por %p104, %p105
      %p107 = scmp.ne.s32.totalorder %s99, %s102
      %p108 = scmp.eq.s32.totalorder %s23, 0
      %p109 = por %p107, %p108
      %p110 = scmp.ne.s32.totalorder %s99, %s102
      %p111 = scmp.eq.s32.totalorder %s28, 7
      %p112 = por %p110, %p111
      %p113 = scmp.ne.s32.totalorder %s102, %s103
      %p114 = scmp.eq.s32.totalorder %s28, 0
      %p115 = por %p113, %p114
      %p116 = scmp.ne.s32.totalorder %s102, %s103
      %p117 = scmp.eq.s32.totalorder %s29, 7
      %p118 = por %p116, %p117
      %p120 = scmp.ne.s32.totalorder %s103, %s119
      %p121 = scmp.eq.s32.totalorder %s29, 0
      %p122 = por %p120, %p121
      %s123 = ssub.s32 %s30, %s42
      %p124 = scmp.eq.s32.totalorder %s123, 0
      %s126 = sadd.s32 %s125, 1
      %s127 = scalar_select %p124, %s125, %s126
      %p130 = pneg %p124
      %p131 = scmp.eq.s32.totalorder %s23, 7
      %p132 = por %p130, %p131
      %p133 = scmp.ne.s32.totalorder %s125, %s128
      %p134 = scmp.eq.s32.totalorder %s23, 0
      %p135 = por %p133, %p134
      %p136 = scmp.ne.s32.totalorder %s125, %s128
      %p137 = scmp.eq.s32.totalorder %s28, 7
      %p138 = por %p136, %p137
      %p139 = scmp.ne.s32.totalorder %s128, %s129
      %p140 = scmp.eq.s32.totalorder %s28, 0
      %p141 = por %p139, %p140
      %p142 = scmp.ne.s32.totalorder %s128, %s129
      %p143 = scmp.eq.s32.totalorder %s29, 7
      %p144 = por %p142, %p143
      %p146 = scmp.ne.s32.totalorder %s129, %s145
      %p147 = scmp.eq.s32.totalorder %s29, 0
      %p148 = por %p146, %p147
      %s150 = sadd.s32 %s149, 1
      %p153 = scmp.eq.s32.totalorder %s23, 7
      %p154 = scmp.ne.s32.totalorder %s149, %s151
      %p155 = scmp.eq.s32.totalorder %s23, 0
      %p156 = por %p154, %p155
      %p157 = scmp.ne.s32.totalorder %s149, %s151
      %p158 = scmp.eq.s32.totalorder %s28, 7
      %p159 = por %p157, %p158
      %p160 = scmp.ne.s32.totalorder %s151, %s152
      %p161 = scmp.eq.s32.totalorder %s28, 0
      %p162 = por %p160, %p161
      %p163 = scmp.ne.s32.totalorder %s151, %s152
      %p164 = scmp.eq.s32.totalorder %s29, 7
      %p165 = por %p163, %p164
      %p167 = scmp.ne.s32.totalorder %s152, %s166
      %p168 = scmp.eq.s32.totalorder %s29, 0
      %p169 = por %p167, %p168
      %s171 = sadd.s32 %s170, 1
      %p174 = scmp.eq.s32.totalorder %s23, 7
      %p175 = scmp.ne.s32.totalorder %s170, %s172
      %p176 = scmp.eq.s32.totalorder %s23, 0
      %p177 = por %p175, %p176
      %p178 = scmp.ne.s32.totalorder %s170, %s172
      %p179 = scmp.eq.s32.totalorder %s28, 7
      %p180 = por %p178, %p179
      %p181 = scmp.ne.s32.totalorder %s172, %s173
      %p182 = scmp.eq.s32.totalorder %s28, 0
      %p183 = por %p181, %p182
      %p184 = scmp.ne.s32.totalorder %s172, %s173
      %p185 = scmp.eq.s32.totalorder %s29, 7
      %p186 = por %p184, %p185
      %p188 = scmp.ne.s32.totalorder %s173, %s187
      %p189 = scmp.eq.s32.totalorder %s29, 0
      %p190 = por %p188, %p189
      %s192 = sadd.s32 %s191, 1
      %p195 = scmp.eq.s32.totalorder %s23, 7
      %p196 = scmp.ne.s32.totalorder %s191, %s193
      %p197 = scmp.eq.s32.totalorder %s23, 0
      %p198 = por %p196, %p197
      %p199 = scmp.ne.s32.totalorder %s191, %s193
      %p200 = scmp.eq.s32.totalorder %s28, 7
      %p201 = por %p199, %p200
      %p202 = scmp.ne.s32.totalorder %s193, %s194
      %p203 = scmp.eq.s32.totalorder %s28, 0
      %p204 = por %p202, %p203
      %p205 = scmp.ne.s32.totalorder %s193, %s194
      %p206 = scmp.eq.s32.totalorder %s29, 7
      %p207 = por %p205, %p206
      %p209 = scmp.ne.s32.totalorder %s194, %s208
      %p210 = scmp.eq.s32.totalorder %s29, 0
      %p211 = por %p209, %p210
      %s212 = ssub.s32 %s30, %s42
      %p213 = scmp.eq.s32.totalorder %s212, 0
      %s215 = sadd.s32 %s214, 1
      %s216 = scalar_select %p213, %s214, %s215
      %p219 = pneg %p213
      %p220 = scmp.eq.s32.totalorder %s23, 7
      %p221 = por %p219, %p220
      %p222 = scmp.ne.s32.totalorder %s214, %s217
      %p223 = scmp.eq.s32.totalorder %s23, 0
      %p224 = por %p222, %p223
      %p225 = scmp.ne.s32.totalorder %s214, %s217
      %p226 = scmp.eq.s32.totalorder %s28, 7
      %p227 = por %p225, %p226
      %p228 = scmp.ne.s32.totalorder %s217, %s218
      %p229 = scmp.eq.s32.totalorder %s28, 0
      %p230 = por %p228, %p229
      %p231 = scmp.ne.s32.totalorder %s217, %s218
      %p232 = scmp.eq.s32.totalorder %s29, 7
      %p233 = por %p231, %p232
      %p235 = scmp.ne.s32.totalorder %s218, %s234
      %p236 = scmp.eq.s32.totalorder %s29, 0
      %p237 = por %p235, %p236
      %p238 = scmp.le.s32.totalorder 1, %s23
      %p239 = scmp.lt.s32.totalorder %s23, 9
      %p240 = pnand %p238, %p239
      %p241 = pneg %p240
      // Predicated region
      $region9: #{tpu_custom_call.1} parent=5 // pred_check
        _
      $region10: #{tpu_custom_call.1} parent=5 // pred_check_branch
        %243 = sbr.rel (%p240) target = $region12
      $region11: #{tpu_custom_call.1} parent=5 // pred_region
        %s244 = ssub.s32 %s23, 1
        // Predicated region
        $region13: #{tpu_custom_call.1} parent=11 // pred_check
          %p245 = pneg %p162
        $region14: #{tpu_custom_call.1} parent=11 // pred_check_branch
          %247 = sbr.rel (%p245) target = $region16
        $region15: #{tpu_custom_call.1} parent=11 // pred_region
          _
        $region16: #{tpu_custom_call.1} parent=11 // pred_fallthru
          _
        // Predicated region
        $region17: #{tpu_custom_call.1} parent=11 // pred_check
          %p248 = pneg %p183
        $region18: #{tpu_custom_call.1} parent=11 // pred_check_branch
          %250 = sbr.rel (%p248) target = $region20
        $region19: #{tpu_custom_call.1} parent=11 // pred_region
          %s252 = ssub.s32 2048, 2048
          %253 = vsyncadd [#allocation9], %s252
          %s254 = sshll.u32 [#allocation10], 4
          %s255 = int_to_ptr.vmem [resolvable:$true] %s254
          %260 = dma.hbm_to_vmem [thread:$0]  %s5, 2048, %s255, [#allocation9], 128, 128, 8
        $region20: #{tpu_custom_call.1} parent=11 // pred_fallthru
          _
        // Predicated region
        $region21: #{tpu_custom_call.1} parent=11 // pred_check
          %p261 = pneg %p204
        $region22: #{tpu_custom_call.1} parent=11 // pred_check_branch
          %263 = sbr.rel (%p261) target = $region24
        $region23: #{tpu_custom_call.1} parent=11 // pred_region
          _
        $region24: #{tpu_custom_call.1} parent=11 // pred_fallthru
          _
      $region12: #{tpu_custom_call.1} parent=5 // pred_fallthru
        _
      %p264 = scmp.lt.s32.totalorder %s23, 8
      // Predicated region
      $region25: #{tpu_custom_call.1} parent=5 // pred_check
        %p265 = pneg %p264
      $region26: #{tpu_custom_call.1} parent=5 // pred_check_branch
        %267 = sbr.rel (%p265) target = $region28
      $region27: #{tpu_custom_call.1} parent=5 // pred_region
        // Predicated region
        $region29: #{tpu_custom_call.1} parent=27 // pred_check
          %p268 = pneg %p57
        $region30: #{tpu_custom_call.1} parent=27 // pred_check_branch
          %270 = sbr.rel (%p268) target = $region32
        $region31: #{tpu_custom_call.1} parent=27 // pred_region
          %s271 = sand.u32 %s47, 1
          %s272 = sand.u32 %s47, 1
          %s273 = smul.addr %s272, 64
          %s274 = scalar_lea.vmem [#allocation4], %s273
          %s275 = smul.u32 4, %s30
          %s276 = smul.u32 2, %s31
          %s277 = smul.addr %s275, 4
          %s278 = sadd.s32 %s276, %s277
          %s279 = smul.addr %s278, 8
          %s280 = scalar_lea.vmem %s0, %s279
          // Predicated region
          $region33: #{tpu_custom_call.1} parent=31 // pred_check
            _
          $region34: #{tpu_custom_call.1} parent=31 // pred_check_branch
            %282 = sbr.rel (0) target = $region36
          $region35: #{tpu_custom_call.1} parent=31 // pred_region
            // Predicated region
            $region37: #{tpu_custom_call.1} parent=35 // pred_check
              _
            $region38: #{tpu_custom_call.1} parent=35 // pred_check_branch
              %284 = sbr.rel (0) target = $region40
            $region39: #{tpu_custom_call.1} parent=35 // pred_region
              loop: start=0, step=1, limit=1
              $region41: #{tpu_custom_call.1} parent=39 // loop_pre_header
                _
              $region42: #{tpu_custom_call.1} parent=39 // loop_header
                %s286 = sphi 0, %s290
                %p287 = scmp.ge.s32.totalorder %s286, 1
                %s291 = sphi %s280, %s280
                %s292 = sphi %s274, %s274
              $region43: #{tpu_custom_call.1} parent=39 // loop_header_branch
                %289 = sbr.rel (%p287) target = $region47
              $region44: #{tpu_custom_call.1} parent=39 // loop_body
                %v293 = vld [vmem:[%s291] sm:$0xff]
                %294 = vst [vmem:[%s292] sm:$0xff] %v293
                %v295 = vld [vmem:[%s291 + $0x8] sm:$0xff]
                %296 = vst [vmem:[%s292 + $0x8] sm:$0xff] %v295
                %v297 = vld [vmem:[%s291 + $0x20] sm:$0xff]
                %298 = vst [vmem:[%s292 + $0x10] sm:$0xff] %v297
                %v299 = vld [vmem:[%s291 + $0x28] sm:$0xff]
                %300 = vst [vmem:[%s292 + $0x18] sm:$0xff] %v299
                %v301 = vld [vmem:[%s291 + $0x40] sm:$0xff]
                %302 = vst [vmem:[%s292 + $0x20] sm:$0xff] %v301
                %v303 = vld [vmem:[%s291 + $0x48] sm:$0xff]
                %304 = vst [vmem:[%s292 + $0x28] sm:$0xff] %v303
                %v305 = vld [vmem:[%s291 + $0x60] sm:$0xff]
                %306 = vst [vmem:[%s292 + $0x30] sm:$0xff] %v305
                %v307 = vld [vmem:[%s291 + $0x68] sm:$0xff]
                %308 = vst [vmem:[%s292 + $0x38] sm:$0xff] %v307
              $region45: #{tpu_custom_call.1} parent=39 // loop_footer
                %s290 = sadd.s32 1, %s286
              $region46: #{tpu_custom_call.1} parent=39 // loop_footer_branch
                %285 = sbr.rel target = $region42
              $region47: #{tpu_custom_call.1} parent=39 // loop_exit
                _
            $region40: #{tpu_custom_call.1} parent=35 // pred_fallthru
              _
            // Predicated region
            $region48: #{tpu_custom_call.1} parent=35 // pred_check
              _
            $region49: #{tpu_custom_call.1} parent=35 // pred_check_branch
              %310 = sbr.rel target = $region51
            $region50: #{tpu_custom_call.1} parent=35 // pred_region
              _
            $region51: #{tpu_custom_call.1} parent=35 // pred_fallthru
              _
          $region36: #{tpu_custom_call.1} parent=31 // pred_fallthru
            _
          %311 = vnop
        $region32: #{tpu_custom_call.1} parent=27 // pred_fallthru
          _
        // Predicated region
        $region52: #{tpu_custom_call.1} parent=27 // pred_check
          %p312 = pneg %p83
        $region53: #{tpu_custom_call.1} parent=27 // pred_check_branch
          %314 = sbr.rel (%p312) target = $region55
        $region54: #{tpu_custom_call.1} parent=27 // pred_region
          %s315 = sand.u32 %s73, 1
          %s316 = scalar_lea.sflag [#allocation6], %s315
          %s317 = sand.u32 %s73, 1
          %s318 = smul.addr %s317, 256
          %s319 = scalar_lea.vmem [#allocation5], %s318
          %s320 = smul.u32 32, %s31
          %s322 = ssub.s32 4096, 4096
          %323 = vsyncadd %s316, %s322
          %s324 = smul.addr %s320, 128
          %s325 = scalar_lea.hbm %s1, %s324
          %s326 = sshll.u32 %s319, 4
          %s327 = int_to_ptr.vmem [resolvable:$true] %s326
          %332 = dma.hbm_to_vmem [thread:$0]  %s325, 4096, %s327, %s316, 128, 128, 8
        $region55: #{tpu_custom_call.1} parent=27 // pred_fallthru
          _
        // Predicated region
        $region56: #{tpu_custom_call.1} parent=27 // pred_check
          %p333 = pneg %p109
        $region57: #{tpu_custom_call.1} parent=27 // pred_check_branch
          %335 = sbr.rel (%p333) target = $region59
        $region58: #{tpu_custom_call.1} parent=27 // pred_region
          %s336 = sand.u32 %s23, 1
          %s337 = scalar_lea.sflag [#allocation9], %s336
          %s338 = sand.u32 %s99, 1
          %s339 = smul.addr %s338, 128
          %s340 = scalar_lea.vmem [#allocation8], %s339
          %s341 = smul.u32 16, %s30
          %s343 = ssub.s32 2048, 2048
          %344 = vsyncadd %s337, %s343
          %s345 = smul.addr %s341, 128
          %s346 = scalar_lea.hbm %s2, %s345
          %s347 = sshll.u32 %s340, 4
          %s348 = int_to_ptr.vmem [resolvable:$true] %s347
          %353 = dma.hbm_to_vmem [thread:$0]  %s346, 2048, %s348, %s337, 128, 128, 8
        $region59: #{tpu_custom_call.1} parent=27 // pred_fallthru
          _
        // Predicated region
        $region60: #{tpu_custom_call.1} parent=27 // pred_check
          %p354 = pneg %p135
        $region61: #{tpu_custom_call.1} parent=27 // pred_check_branch
          %356 = sbr.rel (%p354) target = $region63
        $region62: #{tpu_custom_call.1} parent=27 // pred_region
          %s357 = smul.u32 16, %s30
          %p358 = scmp.lt.s32.totalorder %s357, 63
          %s359 = scalar_select %p358, %s357, 63
          %s360 = smul.addr %s359, 8
          %s361 = scalar_lea.vmem %s3, %s360
          %s362 = smul.u32 16, %s30
        $region63: #{tpu_custom_call.1} parent=27 // pred_fallthru
          _
      $region28: #{tpu_custom_call.1} parent=5 // pred_fallthru
        _
      %p363 = scmp.le.s32.totalorder 1, %s23
      %p364 = scmp.lt.s32.totalorder %s23, 9
      %p365 = pnand %p363, %p364
      %p366 = pneg %p365
      // Predicated region
      $region64: #{tpu_custom_call.1} parent=5 // pred_check
        _
      $region65: #{tpu_custom_call.1} parent=5 // pred_check_branch
        %368 = sbr.rel (%p365) target = $region67
      $region66: #{tpu_custom_call.1} parent=5 // pred_region
        %s369 = ssub.s32 %s23, 1
        %s370 = sand.u32 %s50, 1
        %s371 = sand.u32 %s50, 1
        %s372 = smul.addr %s371, 64
        %s373 = scalar_lea.vmem [#allocation4], %s372
        // Predicated region
        $region68: #{tpu_custom_call.1} parent=66 // pred_check
          %p374 = pneg %p63
        $region69: #{tpu_custom_call.1} parent=66 // pred_check_branch
          %376 = sbr.rel (%p374) target = $region71
        $region70: #{tpu_custom_call.1} parent=66 // pred_region
          _
        $region71: #{tpu_custom_call.1} parent=66 // pred_fallthru
          _
        %s377 = sand.u32 %s76, 1
        %s378 = scalar_lea.sflag [#allocation6], %s377
        %s379 = sand.u32 %s76, 1
        %s380 = smul.addr %s379, 256
        %s381 = scalar_lea.vmem [#allocation5], %s380
        // Predicated region
        $region72: #{tpu_custom_call.1} parent=66 // pred_check
          %p382 = pneg %p89
        $region73: #{tpu_custom_call.1} parent=66 // pred_check_branch
          %384 = sbr.rel (%p382) target = $region75
        $region74: #{tpu_custom_call.1} parent=66 // pred_region
          %385 = dma.done %s378, 4096
        $region75: #{tpu_custom_call.1} parent=66 // pred_fallthru
          _
        %s386 = sand.u32 %s28, 1
        %s387 = scalar_lea.sflag [#allocation9], %s386
        %s388 = sand.u32 %s102, 1
        %s389 = smul.addr %s388, 128
        %s390 = scalar_lea.vmem [#allocation8], %s389
        // Predicated region
        $region76: #{tpu_custom_call.1} parent=66 // pred_check
          %p391 = pneg %p115
        $region77: #{tpu_custom_call.1} parent=66 // pred_check_branch
          %393 = sbr.rel (%p391) target = $region79
        $region78: #{tpu_custom_call.1} parent=66 // pred_region
          %394 = dma.done %s387, 2048
        $region79: #{tpu_custom_call.1} parent=66 // pred_fallthru
          _
        // Predicated region
        $region80: #{tpu_custom_call.1} parent=66 // pred_check
          %p395 = pneg %p183
        $region81: #{tpu_custom_call.1} parent=66 // pred_check_branch
          %397 = sbr.rel (%p395) target = $region83
        $region82: #{tpu_custom_call.1} parent=66 // pred_region
          %398 = dma.done [#allocation9], 2048
        $region83: #{tpu_custom_call.1} parent=66 // pred_fallthru
          _
        %s399 = sand.u32 %s50, 1
        %s400 = sand.u32 %s50, 1
        %s401 = smul.addr %s400, 64
        %s402 = scalar_lea.vmem [#allocation4], %s401
        %p403 = pneg %p63
        %p404 = pneg %p60
        %s405 = sand.u32 %s76, 1
        %s406 = scalar_lea.sflag [#allocation6], %s405
        %s407 = sand.u32 %s76, 1
        %s408 = smul.addr %s407, 256
        %s409 = scalar_lea.vmem [#allocation5], %s408
        %p410 = pneg %p89
        %p411 = pneg %p86
        %s412 = sand.u32 %s28, 1
        %s413 = scalar_lea.sflag [#allocation9], %s412
        %s414 = sand.u32 %s102, 1
        %s415 = smul.addr %s414, 128
        %s416 = scalar_lea.vmem [#allocation8], %s415
        %p417 = pneg %p115
        %p418 = pneg %p112
        %s419 = smul.u32 16, %s32
        %p420 = scmp.lt.s32.totalorder %s419, 63
        %s421 = scalar_select %p420, %s419, 63
        %s422 = smul.addr %s421, 8
        %s423 = scalar_lea.vmem %s3, %s422
        %p424 = pneg %p141
        %p425 = pneg %p138
        %p426 = pneg %p162
        %p427 = pneg %p159
        %p428 = pneg %p183
        %p429 = pneg %p180
        %p430 = pneg %p204
        %p431 = pneg %p201
        %p432 = pneg %p230
        %p433 = pneg %p227
        %s434 = sand.u32 %s217, 1
        %s435 = scalar_lea.sflag [#allocation7], %s434
        %s436 = sand.u32 %s217, 1
        %s437 = smul.addr %s436, 128
        %s438 = scalar_lea.vmem [#allocation11], %s437
        %s439 = smul.u32 4, %s32
        %s440 = smul.u32 2, %s33
        %s441 = smul.u32 32, %s33
        %s442 = smul.u32 16, %s32
        %s443 = smul.u32 16, %s32
        %p444 = scmp.lt.s32.totalorder %s443, 63
        %s445 = scalar_select %p444, %s443, 63
        %s446 = smul.addr %s445, 8
        %s447 = scalar_lea.vmem %s3, %s446
        %s448 = smul.u32 16, %s32
        %s449 = smul.u32 16, %s32
        %p450 = scmp.eq.s32.totalorder %s33, 0
        // Predicated region
        $region84: #{tpu_custom_call.1} parent=66 // pred_check
          %p451 = pneg %p450
        $region85: #{tpu_custom_call.1} parent=66 // pred_check_branch
          %453 = sbr.rel (%p451) target = $region87
        $region86: #{tpu_custom_call.1} parent=66 // pred_region
          %454 = vst [vmem:[#allocation2] sm:$0xff] 0.0
          %455 = vst [vmem:[#allocation2 + $0x8] sm:$0xff] 0.0
          %456 = vst [vmem:[#allocation2 + $0x10] sm:$0xff] 0.0
          %457 = vst [vmem:[#allocation2 + $0x18] sm:$0xff] 0.0
          %458 = vst [vmem:[#allocation2 + $0x20] sm:$0xff] 0.0
          %459 = vst [vmem:[#allocation2 + $0x28] sm:$0xff] 0.0
          %460 = vst [vmem:[#allocation2 + $0x30] sm:$0xff] 0.0
          %461 = vst [vmem:[#allocation2 + $0x38] sm:$0xff] 0.0
          %462 = vst [vmem:[#allocation2 + $0x40] sm:$0xff] 0.0
          %463 = vst [vmem:[#allocation2 + $0x48] sm:$0xff] 0.0
          %464 = vst [vmem:[#allocation2 + $0x50] sm:$0xff] 0.0
          %465 = vst [vmem:[#allocation2 + $0x58] sm:$0xff] 0.0
          %466 = vst [vmem:[#allocation2 + $0x60] sm:$0xff] 0.0
          %467 = vst [vmem:[#allocation2 + $0x68] sm:$0xff] 0.0
          %468 = vst [vmem:[#allocation2 + $0x70] sm:$0xff] 0.0
          %469 = vst [vmem:[#allocation2 + $0x78] sm:$0xff] 0.0
        $region87: #{tpu_custom_call.1} parent=66 // pred_fallthru
          _
        %v470 = vld [vmem:[%s373] sm:$0xff]
        %v471 = vld [vmem:[%s373 + $0x8] sm:$0xff]
        %v472 = vld [vmem:[%s373 + $0x10] sm:$0xff]
        %v473 = vld [vmem:[%s373 + $0x18] sm:$0xff]
        %v474 = vld [vmem:[%s373 + $0x20] sm:$0xff]
        %v475 = vld [vmem:[%s373 + $0x28] sm:$0xff]
        %v476 = vld [vmem:[%s373 + $0x30] sm:$0xff]
        %v477 = vld [vmem:[%s373 + $0x38] sm:$0xff]
        %v478 = vunpack.c.0.s8 %v470
        %v479 = vunpack.c.0.s8 %v471
        %v480 = vunpack.c.1.s8 %v470
        %v481 = vunpack.c.1.s8 %v471
        %v482 = vunpack.c.2.s8 %v470
        %v483 = vunpack.c.2.s8 %v471
        %v484 = vunpack.c.3.s8 %v470
        %v485 = vunpack.c.3.s8 %v471
        %v486 = vunpack.c.0.s8 %v472
        %v487 = vunpack.c.0.s8 %v473
        %v488 = vunpack.c.1.s8 %v472
        %v489 = vunpack.c.1.s8 %v473
        %v490 = vunpack.c.2.s8 %v472
        %v491 = vunpack.c.2.s8 %v473
        %v492 = vunpack.c.3.s8 %v472
        %v493 = vunpack.c.3.s8 %v473
        %v494 = vunpack.c.0.s8 %v474
        %v495 = vunpack.c.0.s8 %v475
        %v496 = vunpack.c.1.s8 %v474
        %v497 = vunpack.c.1.s8 %v475
        %v498 = vunpack.c.2.s8 %v474
        %v499 = vunpack.c.2.s8 %v475
        %v500 = vunpack.c.3.s8 %v474
        %v501 = vunpack.c.3.s8 %v475
        %v502 = vunpack.c.0.s8 %v476
        %v503 = vunpack.c.0.s8 %v477
        %v504 = vunpack.c.1.s8 %v476
        %v505 = vunpack.c.1.s8 %v477
        %v506 = vunpack.c.2.s8 %v476
        %v507 = vunpack.c.2.s8 %v477
        %v508 = vunpack.c.3.s8 %v476
        %v509 = vunpack.c.3.s8 %v477
        %v510 = vcvt.s32.f32 %v478
        %v511 = vcvt.s32.f32 %v479
        %v512 = vcvt.s32.f32 %v480
        %v513 = vcvt.s32.f32 %v481
        %v514 = vcvt.s32.f32 %v482
        %v515 = vcvt.s32.f32 %v483
        %v516 = vcvt.s32.f32 %v484
        %v517 = vcvt.s32.f32 %v485
        %v518 = vcvt.s32.f32 %v486
        %v519 = vcvt.s32.f32 %v487
        %v520 = vcvt.s32.f32 %v488
        %v521 = vcvt.s32.f32 %v489
        %v522 = vcvt.s32.f32 %v490
        %v523 = vcvt.s32.f32 %v491
        %v524 = vcvt.s32.f32 %v492
        %v525 = vcvt.s32.f32 %v493
        %v526 = vcvt.s32.f32 %v494
        %v527 = vcvt.s32.f32 %v495
        %v528 = vcvt.s32.f32 %v496
        %v529 = vcvt.s32.f32 %v497
        %v530 = vcvt.s32.f32 %v498
        %v531 = vcvt.s32.f32 %v499
        %v532 = vcvt.s32.f32 %v500
        %v533 = vcvt.s32.f32 %v501
        %v534 = vcvt.s32.f32 %v502
        %v535 = vcvt.s32.f32 %v503
        %v536 = vcvt.s32.f32 %v504
        %v537 = vcvt.s32.f32 %v505
        %v538 = vcvt.s32.f32 %v506
        %v539 = vcvt.s32.f32 %v507
        %v540 = vcvt.s32.f32 %v508
        %v541 = vcvt.s32.f32 %v509
        %v542 = vld [vmem:[#allocation2] sm:$0xff]
        %v543 = vld [vmem:[#allocation2 + $0x8] sm:$0xff]
        %v544 = vld [vmem:[#allocation2 + $0x10] sm:$0xff]
        %v545 = vld [vmem:[#allocation2 + $0x18] sm:$0xff]
        %v546 = vld [vmem:[#allocation2 + $0x20] sm:$0xff]
        %v547 = vld [vmem:[#allocation2 + $0x28] sm:$0xff]
        %v548 = vld [vmem:[#allocation2 + $0x30] sm:$0xff]
        %v549 = vld [vmem:[#allocation2 + $0x38] sm:$0xff]
        %v550 = vld [vmem:[#allocation2 + $0x40] sm:$0xff]
        %v551 = vld [vmem:[#allocation2 + $0x48] sm:$0xff]
        %v552 = vld [vmem:[#allocation2 + $0x50] sm:$0xff]
        %v553 = vld [vmem:[#allocation2 + $0x58] sm:$0xff]
        %v554 = vld [vmem:[#allocation2 + $0x60] sm:$0xff]
        %v555 = vld [vmem:[#allocation2 + $0x68] sm:$0xff]
        %v556 = vld [vmem:[#allocation2 + $0x70] sm:$0xff]
        %v557 = vld [vmem:[#allocation2 + $0x78] sm:$0xff]
        %v558 = vld [vmem:[%s381] sm:$0xff]
        %v559 = vld [vmem:[%s381 + $0x8] sm:$0xff]
        %v560 = vld [vmem:[%s381 + $0x10] sm:$0xff]
        %v561 = vld [vmem:[%s381 + $0x18] sm:$0xff]
        %v562 = vld [vmem:[%s381 + $0x20] sm:$0xff]
        %v563 = vld [vmem:[%s381 + $0x28] sm:$0xff]
        %v564 = vld [vmem:[%s381 + $0x30] sm:$0xff]
        %v565 = vld [vmem:[%s381 + $0x38] sm:$0xff]
        %v566 = vld [vmem:[%s381 + $0x40] sm:$0xff]
        %v567 = vld [vmem:[%s381 + $0x48] sm:$0xff]
        %v568 = vld [vmem:[%s381 + $0x50] sm:$0xff]
        %v569 = vld [vmem:[%s381 + $0x58] sm:$0xff]
        %v570 = vld [vmem:[%s381 + $0x60] sm:$0xff]
        %v571 = vld [vmem:[%s381 + $0x68] sm:$0xff]
        %v572 = vld [vmem:[%s381 + $0x70] sm:$0xff]
        %v573 = vld [vmem:[%s381 + $0x78] sm:$0xff]
        %v574 = vld [vmem:[%s381 + $0x80] sm:$0xff]
        %v575 = vld [vmem:[%s381 + $0x88] sm:$0xff]
        %v576 = vld [vmem:[%s381 + $0x90] sm:$0xff]
        %v577 = vld [vmem:[%s381 + $0x98] sm:$0xff]
        %v578 = vld [vmem:[%s381 + $0xa0] sm:$0xff]
        %v579 = vld [vmem:[%s381 + $0xa8] sm:$0xff]
        %v580 = vld [vmem:[%s381 + $0xb0] sm:$0xff]
        %v581 = vld [vmem:[%s381 + $0xb8] sm:$0xff]
        %v582 = vld [vmem:[%s381 + $0xc0] sm:$0xff]
        %v583 = vld [vmem:[%s381 + $0xc8] sm:$0xff]
        %v584 = vld [vmem:[%s381 + $0xd0] sm:$0xff]
        %v585 = vld [vmem:[%s381 + $0xd8] sm:$0xff]
        %v586 = vld [vmem:[%s381 + $0xe0] sm:$0xff]
        %v587 = vld [vmem:[%s381 + $0xe8] sm:$0xff]
        %v588 = vld [vmem:[%s381 + $0xf0] sm:$0xff]
        %v589 = vld [vmem:[%s381 + $0xf8] sm:$0xff]
        %590 = vmatprep.subr.mxu0 0.0
        %591 = vmatpush1.msra.mxu0 %v558
        %592 = vmatprep.subr.mxu0 0.0
        %593 = vmatpush1.msra.mxu0 %v559
        %594 = vmatprep.subr.mxu0 0.0
        %595 = vmatpush1.msra.mxu0 %v560
        %596 = vmatprep.subr.mxu0 0.0
        %597 = vmatpush1.msra.mxu0 %v561
        %598 = vmatprep.subr.mxu0 0.0
        %599 = vmatpush1.msra.mxu0 %v562
        %600 = vmatprep.subr.mxu0 0.0
        %601 = vmatpush1.msra.mxu0 %v563
        %602 = vmatprep.subr.mxu0 0.0
        %603 = vmatpush1.msra.mxu0 %v564
        %604 = vmatprep.subr.mxu0 0.0
        %605 = vmatpush1.msra.mxu0 %v565
        %606 = vmatprep.subr.mxu0 0.0
        %607 = vmatpush1.msra.mxu0 %v566
        %608 = vmatprep.subr.mxu0 0.0
        %609 = vmatpush1.msra.mxu0 %v567
        %610 = vmatprep.subr.mxu0 0.0
        %611 = vmatpush1.msra.mxu0 %v568
        %612 = vmatprep.subr.mxu0 0.0
        %613 = vmatpush1.msra.mxu0 %v569
        %614 = vmatprep.subr.mxu0 0.0
        %615 = vmatpush1.msra.mxu0 %v570
        %616 = vmatprep.subr.mxu0 0.0
        %617 = vmatpush1.msra.mxu0 %v571
        %618 = vmatprep.subr.mxu0 0.0
        %619 = vmatpush1.msra.mxu0 %v572
        %620 = vmatprep.subr.mxu0 0.0
        %621 = vmatpush1.msra.mxu0 %v573
        %622 = vmatprep.subr.mxu0 0.0
        %623 = vmatpush1.msra.mxu0 %v574
        %624 = vmatprep.subr.mxu0 0.0
        %625 = vmatpush1.msra.mxu0 %v575
        %626 = vmatprep.subr.mxu0 0.0
        %627 = vmatpush1.msra.mxu0 %v576
        %628 = vmatprep.subr.mxu0 0.0
        %629 = vmatpush1.msra.mxu0 %v577
        %630 = vmatprep.subr.mxu0 0.0
        %631 = vmatpush1.msra.mxu0 %v578
        %632 = vmatprep.subr.mxu0 0.0
        %633 = vmatpush1.msra.mxu0 %v579
        %634 = vmatprep.subr.mxu0 0.0
        %635 = vmatpush1.msra.mxu0 %v580
        %636 = vmatprep.subr.mxu0 0.0
        %637 = vmatpush1.msra.mxu0 %v581
        %638 = vmatprep.subr.mxu0 0.0
        %639 = vmatpush1.msra.mxu0 %v582
        %640 = vmatprep.subr.mxu0 0.0
        %641 = vmatpush1.msra.mxu0 %v583
        %642 = vmatprep.subr.mxu0 0.0
        %643 = vmatpush1.msra.mxu0 %v584
        %644 = vmatprep.subr.mxu0 0.0
        %645 = vmatpush1.msra.mxu0 %v585
        %646 = vmatprep.subr.mxu0 0.0
        %647 = vmatpush1.msra.mxu0 %v586
        %648 = vmatprep.subr.mxu0 0.0
        %649 = vmatpush1.msra.mxu0 %v587
        %650 = vmatprep.subr.mxu0 0.0
        %651 = vmatpush1.msra.mxu0 %v588
        %652 = vmatprep.subr.mxu0 0.0
        %653 = vmatpush1.msra.mxu0 %v589
        %654 = vmatprep.mubr.f32.mxu0 %v511
        %655 = vmatmul.mubr.f32.gmra.mrb[0].mxu0 %v510
        %v656 = vpop.f32.mrb[0].mxu0
        %v657 = vadd.f32 0.0, %v656
        %v658 = vpop.f32.mrb[0].mxu0
        %659 = vmatprep.mubr.f32.mxu0 %v513
        %660 = vmatmul.mubr.f32.gmra.mrb[0].mxu0 %v512
        %v661 = vpop.f32.mrb[0].mxu0
        %v662 = vadd.f32 0.0, %v661
        %v663 = vpop.f32.mrb[0].mxu0
        %664 = vmatprep.mubr.f32.mxu0 %v515
        %665 = vmatmul.mubr.f32.gmra.mrb[0].mxu0 %v514
        %v666 = vpop.f32.mrb[0].mxu0
        %v667 = vadd.f32 0.0, %v666
        %v668 = vpop.f32.mrb[0].mxu0
        %669 = vmatprep.mubr.f32.mxu0 %v517
        %670 = vmatmul.mubr.f32.gmra.mrb[0].mxu0 %v516
        %v671 = vpop.f32.mrb[0].mxu0
        %v672 = vadd.f32 0.0, %v671
        %v673 = vpop.f32.mrb[0].mxu0
        %674 = vmatprep.mubr.f32.mxu0 %v519
        %675 = vmatmul.mubr.f32.gmra.mrb[0].mxu0 %v518
        %v676 = vpop.f32.mrb[0].mxu0
        %v677 = vadd.f32 0.0, %v676
        %v678 = vpop.f32.mrb[0].mxu0
        %679 = vmatprep.mubr.f32.mxu0 %v521
        %680 = vmatmul.mubr.f32.gmra.mrb[0].mxu0 %v520
        %v681 = vpop.f32.mrb[0].mxu0
        %v682 = vadd.f32 0.0, %v681
        %v683 = vpop.f32.mrb[0].mxu0
        %684 = vmatprep.mubr.f32.mxu0 %v523
        %685 = vmatmul.mubr.f32.gmra.mrb[0].mxu0 %v522
        %v686 = vpop.f32.mrb[0].mxu0
        %v687 = vadd.f32 0.0, %v686
        %v688 = vpop.f32.mrb[0].mxu0
        %689 = vmatprep.mubr.f32.mxu0 %v525
        %690 = vmatmul.mubr.f32.gmra.mrb[0].mxu0 %v524
        %v691 = vpop.f32.mrb[0].mxu0
        %v692 = vadd.f32 0.0, %v691
        %v693 = vpop.f32.mrb[0].mxu0
        %694 = vmatprep.mubr.f32.mxu0 %v527
        %695 = vmatmul.mubr.f32.gmra.mrb[0].mxu0 %v526
        %v696 = vpop.f32.mrb[0].mxu0
        %v697 = vadd.f32 0.0, %v696
        %v698 = vpop.f32.mrb[0].mxu0
        %699 = vmatprep.mubr.f32.mxu0 %v529
        %700 = vmatmul.mubr.f32.gmra.mrb[0].mxu0 %v528
        %v701 = vpop.f32.mrb[0].mxu0
        %v702 = vadd.f32 0.0, %v701
        %v703 = vpop.f32.mrb[0].mxu0
        %704 = vmatprep.mubr.f32.mxu0 %v531
        %705 = vmatmul.mubr.f32.gmra.mrb[0].mxu0 %v530
        %v706 = vpop.f32.mrb[0].mxu0
        %v707 = vadd.f32 0.0, %v706
        %v708 = vpop.f32.mrb[0].mxu0
        %709 = vmatprep.mubr.f32.mxu0 %v533
        %710 = vmatmul.mubr.f32.gmra.mrb[0].mxu0 %v532
        %v711 = vpop.f32.mrb[0].mxu0
        %v712 = vadd.f32 0.0, %v711
        %v713 = vpop.f32.mrb[0].mxu0
        %714 = vmatprep.mubr.f32.mxu0 %v535
        %715 = vmatmul.mubr.f32.gmra.mrb[0].mxu0 %v534
        %v716 = vpop.f32.mrb[0].mxu0
        %v717 = vadd.f32 0.0, %v716
        %v718 = vpop.f32.mrb[0].mxu0
        %719 = vmatprep.mubr.f32.mxu0 %v537
        %720 = vmatmul.mubr.f32.gmra.mrb[0].mxu0 %v536
        %v721 = vpop.f32.mrb[0].mxu0
        %v722 = vadd.f32 0.0, %v721
        %v723 = vpop.f32.mrb[0].mxu0
        %724 = vmatprep.mubr.f32.mxu0 %v539
        %725 = vmatmul.mubr.f32.gmra.mrb[0].mxu0 %v538
        %v726 = vpop.f32.mrb[0].mxu0
        %v727 = vadd.f32 0.0, %v726
        %v728 = vpop.f32.mrb[0].mxu0
        %729 = vmatprep.mubr.f32.mxu0 %v541
        %730 = vmatmul.mubr.f32.gmra.mrb[0].mxu0 %v540
        %v731 = vpop.f32.mrb[0].mxu0
        %v732 = vadd.f32 0.0, %v731
        %v733 = vpop.f32.mrb[0].mxu0
        %734 = vdwg.mxu0
        %v735 = vadd.f32 %v542, %v657
        %v736 = vadd.f32 %v543, %v662
        %v737 = vadd.f32 %v544, %v667
        %v738 = vadd.f32 %v545, %v672
        %v739 = vadd.f32 %v546, %v677
        %v740 = vadd.f32 %v547, %v682
        %v741 = vadd.f32 %v548, %v687
        %v742 = vadd.f32 %v549, %v692
        %v743 = vadd.f32 %v550, %v697
        %v744 = vadd.f32 %v551, %v702
        %v745 = vadd.f32 %v552, %v707
        %v746 = vadd.f32 %v553, %v712
        %v747 = vadd.f32 %v554, %v717
        %v748 = vadd.f32 %v555, %v722
        %v749 = vadd.f32 %v556, %v727
        %v750 = vadd.f32 %v557, %v732
        %751 = vst [vmem:[#allocation2] sm:$0xff] %v735
        %752 = vst [vmem:[#allocation2 + $0x8] sm:$0xff] %v736
        %753 = vst [vmem:[#allocation2 + $0x10] sm:$0xff] %v737
        %754 = vst [vmem:[#allocation2 + $0x18] sm:$0xff] %v738
        %755 = vst [vmem:[#allocation2 + $0x20] sm:$0xff] %v739
        %756 = vst [vmem:[#allocation2 + $0x28] sm:$0xff] %v740
        %757 = vst [vmem:[#allocation2 + $0x30] sm:$0xff] %v741
        %758 = vst [vmem:[#allocation2 + $0x38] sm:$0xff] %v742
        %759 = vst [vmem:[#allocation2 + $0x40] sm:$0xff] %v743
        %760 = vst [vmem:[#allocation2 + $0x48] sm:$0xff] %v744
        %761 = vst [vmem:[#allocation2 + $0x50] sm:$0xff] %v745
        %762 = vst [vmem:[#allocation2 + $0x58] sm:$0xff] %v746
        %763 = vst [vmem:[#allocation2 + $0x60] sm:$0xff] %v747
        %764 = vst [vmem:[#allocation2 + $0x68] sm:$0xff] %v748
        %765 = vst [vmem:[#allocation2 + $0x70] sm:$0xff] %v749
        %766 = vst [vmem:[#allocation2 + $0x78] sm:$0xff] %v750
        %p767 = scmp.eq.s32.totalorder %s33, 1
        // Predicated region
        $region88: #{tpu_custom_call.1} parent=66 // pred_check
          %p768 = pneg %p767
        $region89: #{tpu_custom_call.1} parent=66 // pred_check_branch
          %770 = sbr.rel (%p768) target = $region91
        $region90: #{tpu_custom_call.1} parent=66 // pred_region
          %v771 = vld [vmem:[%s390] sm:$0xff]
          %v772 = vld [vmem:[%s390 + $0x8] sm:$0xff]
          %v773 = vld [vmem:[%s390 + $0x10] sm:$0xff]
          %v774 = vld [vmem:[%s390 + $0x18] sm:$0xff]
          %v775 = vld [vmem:[%s390 + $0x20] sm:$0xff]
          %v776 = vld [vmem:[%s390 + $0x28] sm:$0xff]
          %v777 = vld [vmem:[%s390 + $0x30] sm:$0xff]
          %v778 = vld [vmem:[%s390 + $0x38] sm:$0xff]
          %v779 = vld [vmem:[%s390 + $0x40] sm:$0xff]
          %v780 = vld [vmem:[%s390 + $0x48] sm:$0xff]
          %v781 = vld [vmem:[%s390 + $0x50] sm:$0xff]
          %v782 = vld [vmem:[%s390 + $0x58] sm:$0xff]
          %v783 = vld [vmem:[%s390 + $0x60] sm:$0xff]
          %v784 = vld [vmem:[%s390 + $0x68] sm:$0xff]
          %v785 = vld [vmem:[%s390 + $0x70] sm:$0xff]
          %v786 = vld [vmem:[%s390 + $0x78] sm:$0xff]
          %v787 = vld [vmem:[#allocation2] sm:$0xff]
          %v788 = vld [vmem:[#allocation2 + $0x8] sm:$0xff]
          %v789 = vld [vmem:[#allocation2 + $0x10] sm:$0xff]
          %v790 = vld [vmem:[#allocation2 + $0x18] sm:$0xff]
          %v791 = vld [vmem:[#allocation2 + $0x20] sm:$0xff]
          %v792 = vld [vmem:[#allocation2 + $0x28] sm:$0xff]
          %v793 = vld [vmem:[#allocation2 + $0x30] sm:$0xff]
          %v794 = vld [vmem:[#allocation2 + $0x38] sm:$0xff]
          %v795 = vld [vmem:[#allocation2 + $0x40] sm:$0xff]
          %v796 = vld [vmem:[#allocation2 + $0x48] sm:$0xff]
          %v797 = vld [vmem:[#allocation2 + $0x50] sm:$0xff]
          %v798 = vld [vmem:[#allocation2 + $0x58] sm:$0xff]
          %v799 = vld [vmem:[#allocation2 + $0x60] sm:$0xff]
          %v800 = vld [vmem:[#allocation2 + $0x68] sm:$0xff]
          %v801 = vld [vmem:[#allocation2 + $0x70] sm:$0xff]
          %v802 = vld [vmem:[#allocation2 + $0x78] sm:$0xff]
          %v803 = vld [vmem:[%s447] sm:$0xff]
          %v804 = vld [vmem:[%s447 + $0x8] sm:$0xff]
          %v805 = vld [vmem:[%s447 + $0x10] sm:$0xff]
          %v806 = vld [vmem:[%s447 + $0x18] sm:$0xff]
          %v807 = vld [vmem:[%s447 + $0x20] sm:$0xff]
          %v808 = vld [vmem:[%s447 + $0x28] sm:$0xff]
          %v809 = vld [vmem:[%s447 + $0x30] sm:$0xff]
          %v810 = vld [vmem:[%s447 + $0x38] sm:$0xff]
          %v811 = vld [vmem:[%s447 + $0x40] sm:$0xff]
          %v812 = vld [vmem:[%s447 + $0x48] sm:$0xff]
          %v813 = vld [vmem:[%s447 + $0x50] sm:$0xff]
          %v814 = vld [vmem:[%s447 + $0x58] sm:$0xff]
          %v815 = vld [vmem:[%s447 + $0x60] sm:$0xff]
          %v816 = vld [vmem:[%s447 + $0x68] sm:$0xff]
          %v817 = vld [vmem:[%s447 + $0x70] sm:$0xff]
          %v818 = vld [vmem:[%s447 + $0x78] sm:$0xff]
          %820 = vset.pattern.permute.xlu0 0
          %821 = vperm.xlu0 %820, %v803
          %v822 = vpop.permute.xlu0 %821
          %825 = vset.pattern.permute.xlu0 0
          %826 = vperm.xlu0 %825, %v804
          %v827 = vpop.permute.xlu0 %826
          %830 = vset.pattern.permute.xlu0 0
          %831 = vperm.xlu0 %830, %v805
          %v832 = vpop.permute.xlu0 %831
          %835 = vset.pattern.permute.xlu0 0
          %836 = vperm.xlu0 %835, %v806
          %v837 = vpop.permute.xlu0 %836
          %840 = vset.pattern.permute.xlu0 0
          %841 = vperm.xlu0 %840, %v807
          %v842 = vpop.permute.xlu0 %841
          %845 = vset.pattern.permute.xlu0 0
          %846 = vperm.xlu0 %845, %v808
          %v847 = vpop.permute.xlu0 %846
          %850 = vset.pattern.permute.xlu0 0
          %851 = vperm.xlu0 %850, %v809
          %v852 = vpop.permute.xlu0 %851
          %855 = vset.pattern.permute.xlu0 0
          %856 = vperm.xlu0 %855, %v810
          %v857 = vpop.permute.xlu0 %856
          %860 = vset.pattern.permute.xlu0 0
          %861 = vperm.xlu0 %860, %v811
          %v862 = vpop.permute.xlu0 %861
          %865 = vset.pattern.permute.xlu0 0
          %866 = vperm.xlu0 %865, %v812
          %v867 = vpop.permute.xlu0 %866
          %870 = vset.pattern.permute.xlu0 0
          %871 = vperm.xlu0 %870, %v813
          %v872 = vpop.permute.xlu0 %871
          %875 = vset.pattern.permute.xlu0 0
          %876 = vperm.xlu0 %875, %v814
          %v877 = vpop.permute.xlu0 %876
          %880 = vset.pattern.permute.xlu0 0
          %881 = vperm.xlu0 %880, %v815
          %v882 = vpop.permute.xlu0 %881
          %885 = vset.pattern.permute.xlu0 0
          %886 = vperm.xlu0 %885, %v816
          %v887 = vpop.permute.xlu0 %886
          %890 = vset.pattern.permute.xlu0 0
          %891 = vperm.xlu0 %890, %v817
          %v892 = vpop.permute.xlu0 %891
          %895 = vset.pattern.permute.xlu0 0
          %896 = vperm.xlu0 %895, %v818
          %v897 = vpop.permute.xlu0 %896
          %v899 = vmul.f32 %v787, %v822
          %v900 = vmul.f32 %v788, %v827
          %v901 = vmul.f32 %v789, %v832
          %v902 = vmul.f32 %v790, %v837
          %v903 = vmul.f32 %v791, %v842
          %v904 = vmul.f32 %v792, %v847
          %v905 = vmul.f32 %v793, %v852
          %v906 = vmul.f32 %v794, %v857
          %v907 = vmul.f32 %v795, %v862
          %v908 = vmul.f32 %v796, %v867
          %v909 = vmul.f32 %v797, %v872
          %v910 = vmul.f32 %v798, %v877
          %v911 = vmul.f32 %v799, %v882
          %v912 = vmul.f32 %v800, %v887
          %v913 = vmul.f32 %v801, %v892
          %v914 = vmul.f32 %v802, %v897
          %v915 = vld [vmem:[%s4] sm:$0x1]
          %v916 = vlaneseq
          %v917 = vshrl.u32 %v916, 7
          %v918 = vsub.s32 0, %v917
          %v919 = vrot.slane %v915, %v918
          %v920 = vmul.f32 %v899, %v919
          %v921 = vmul.f32 %v900, %v919
          %v922 = vmul.f32 %v901, %v919
          %v923 = vmul.f32 %v902, %v919
          %v924 = vmul.f32 %v903, %v919
          %v925 = vmul.f32 %v904, %v919
          %v926 = vmul.f32 %v905, %v919
          %v927 = vmul.f32 %v906, %v919
          %v928 = vmul.f32 %v907, %v919
          %v929 = vmul.f32 %v908, %v919
          %v930 = vmul.f32 %v909, %v919
          %v931 = vmul.f32 %v910, %v919
          %v932 = vmul.f32 %v911, %v919
          %v933 = vmul.f32 %v912, %v919
          %v934 = vmul.f32 %v913, %v919
          %v935 = vmul.f32 %v914, %v919
          %v936 = vld [vmem:[%s4 + $0x1] sm:$0x1]
          %v937 = vlaneseq
          %v938 = vshrl.u32 %v937, 7
          %v939 = vsub.s32 0, %v938
          %v940 = vrot.slane %v936, %v939
          %v941 = vmul.f32 %v771, %v940
          %v942 = vmul.f32 %v772, %v940
          %v943 = vmul.f32 %v773, %v940
          %v944 = vmul.f32 %v774, %v940
          %v945 = vmul.f32 %v775, %v940
          %v946 = vmul.f32 %v776, %v940
          %v947 = vmul.f32 %v777, %v940
          %v948 = vmul.f32 %v778, %v940
          %v949 = vmul.f32 %v779, %v940
          %v950 = vmul.f32 %v780, %v940
          %v951 = vmul.f32 %v781, %v940
          %v952 = vmul.f32 %v782, %v940
          %v953 = vmul.f32 %v783, %v940
          %v954 = vmul.f32 %v784, %v940
          %v955 = vmul.f32 %v785, %v940
          %v956 = vmul.f32 %v786, %v940
          %v957 = vadd.f32 %v920, %v941
          %v958 = vadd.f32 %v921, %v942
          %v959 = vadd.f32 %v922, %v943
          %v960 = vadd.f32 %v923, %v944
          %v961 = vadd.f32 %v924, %v945
          %v962 = vadd.f32 %v925, %v946
          %v963 = vadd.f32 %v926, %v947
          %v964 = vadd.f32 %v927, %v948
          %v965 = vadd.f32 %v928, %v949
          %v966 = vadd.f32 %v929, %v950
          %v967 = vadd.f32 %v930, %v951
          %v968 = vadd.f32 %v931, %v952
          %v969 = vadd.f32 %v932, %v953
          %v970 = vadd.f32 %v933, %v954
          %v971 = vadd.f32 %v934, %v955
          %v972 = vadd.f32 %v935, %v956
          %973 = vadd.xlane.f32.xlu0 %v957
          %v974 = vpop.xlane.xlu0 %973
          %975 = vadd.xlane.f32.xlu0 %v958
          %v976 = vpop.xlane.xlu0 %975
          %977 = vadd.xlane.f32.xlu0 %v959
          %v978 = vpop.xlane.xlu0 %977
          %979 = vadd.xlane.f32.xlu0 %v960
          %v980 = vpop.xlane.xlu0 %979
          %981 = vadd.xlane.f32.xlu0 %v961
          %v982 = vpop.xlane.xlu0 %981
          %983 = vadd.xlane.f32.xlu0 %v962
          %v984 = vpop.xlane.xlu0 %983
          %985 = vadd.xlane.f32.xlu0 %v963
          %v986 = vpop.xlane.xlu0 %985
          %987 = vadd.xlane.f32.xlu0 %v964
          %v988 = vpop.xlane.xlu0 %987
          %989 = vadd.xlane.f32.xlu0 %v965
          %v990 = vpop.xlane.xlu0 %989
          %991 = vadd.xlane.f32.xlu0 %v966
          %v992 = vpop.xlane.xlu0 %991
          %993 = vadd.xlane.f32.xlu0 %v967
          %v994 = vpop.xlane.xlu0 %993
          %995 = vadd.xlane.f32.xlu0 %v968
          %v996 = vpop.xlane.xlu0 %995
          %997 = vadd.xlane.f32.xlu0 %v969
          %v998 = vpop.xlane.xlu0 %997
          %999 = vadd.xlane.f32.xlu0 %v970
          %v1000 = vpop.xlane.xlu0 %999
          %1001 = vadd.xlane.f32.xlu0 %v971
          %v1002 = vpop.xlane.xlu0 %1001
          %1003 = vadd.xlane.f32.xlu0 %v972
          %v1004 = vpop.xlane.xlu0 %1003
          %s1005 = sld [smem:[#allocation3]]
          %v1006 = vstv %s1005
          %v1007 = vadd.f32 %v974, %v1006
          %v1008 = vadd.f32 %v976, %v1006
          %v1009 = vadd.f32 %v978, %v1006
          %v1010 = vadd.f32 %v980, %v1006
          %v1011 = vadd.f32 %v982, %v1006
          %v1012 = vadd.f32 %v984, %v1006
          %v1013 = vadd.f32 %v986, %v1006
          %v1014 = vadd.f32 %v988, %v1006
          %v1015 = vadd.f32 %v990, %v1006
          %v1016 = vadd.f32 %v992, %v1006
          %v1017 = vadd.f32 %v994, %v1006
          %v1018 = vadd.f32 %v996, %v1006
          %v1019 = vadd.f32 %v998, %v1006
          %v1020 = vadd.f32 %v1000, %v1006
          %v1021 = vadd.f32 %v1002, %v1006
          %v1022 = vadd.f32 %v1004, %v1006
          %v1023 = vxor.u32 %v1007, 2147483648
          %v1024 = vxor.u32 %v1008, 2147483648
          %v1025 = vxor.u32 %v1009, 2147483648
          %v1026 = vxor.u32 %v1010, 2147483648
          %v1027 = vxor.u32 %v1011, 2147483648
          %v1028 = vxor.u32 %v1012, 2147483648
          %v1029 = vxor.u32 %v1013, 2147483648
          %v1030 = vxor.u32 %v1014, 2147483648
          %v1031 = vxor.u32 %v1015, 2147483648
          %v1032 = vxor.u32 %v1016, 2147483648
          %v1033 = vxor.u32 %v1017, 2147483648
          %v1034 = vxor.u32 %v1018, 2147483648
          %v1035 = vxor.u32 %v1019, 2147483648
          %v1036 = vxor.u32 %v1020, 2147483648
          %v1037 = vxor.u32 %v1021, 2147483648
          %v1038 = vxor.u32 %v1022, 2147483648
          %v1039 = vmul.f32 %v1023, 1.442695
          %v1040 = vpow.pop %v1039
          %v1041 = vmul.f32 %v1024, 1.442695
          %v1042 = vpow.pop %v1041
          %v1043 = vmul.f32 %v1025, 1.442695
          %v1044 = vpow.pop %v1043
          %v1045 = vmul.f32 %v1026, 1.442695
          %v1046 = vpow.pop %v1045
          %v1047 = vmul.f32 %v1027, 1.442695
          %v1048 = vpow.pop %v1047
          %v1049 = vmul.f32 %v1028, 1.442695
          %v1050 = vpow.pop %v1049
          %v1051 = vmul.f32 %v1029, 1.442695
          %v1052 = vpow.pop %v1051
          %v1053 = vmul.f32 %v1030, 1.442695
          %v1054 = vpow.pop %v1053
          %v1055 = vmul.f32 %v1031, 1.442695
          %v1056 = vpow.pop %v1055
          %v1057 = vmul.f32 %v1032, 1.442695
          %v1058 = vpow.pop %v1057
          %v1059 = vmul.f32 %v1033, 1.442695
          %v1060 = vpow.pop %v1059
          %v1061 = vmul.f32 %v1034, 1.442695
          %v1062 = vpow.pop %v1061
          %v1063 = vmul.f32 %v1035, 1.442695
          %v1064 = vpow.pop %v1063
          %v1065 = vmul.f32 %v1036, 1.442695
          %v1066 = vpow.pop %v1065
          %v1067 = vmul.f32 %v1037, 1.442695
          %v1068 = vpow.pop %v1067
          %v1069 = vmul.f32 %v1038, 1.442695
          %v1070 = vpow.pop %v1069
          %v1071 = vadd.f32 %v1040, 1.0
          %v1072 = vadd.f32 %v1042, 1.0
          %v1073 = vadd.f32 %v1044, 1.0
          %v1074 = vadd.f32 %v1046, 1.0
          %v1075 = vadd.f32 %v1048, 1.0
          %v1076 = vadd.f32 %v1050, 1.0
          %v1077 = vadd.f32 %v1052, 1.0
          %v1078 = vadd.f32 %v1054, 1.0
          %v1079 = vadd.f32 %v1056, 1.0
          %v1080 = vadd.f32 %v1058, 1.0
          %v1081 = vadd.f32 %v1060, 1.0
          %v1082 = vadd.f32 %v1062, 1.0
          %v1083 = vadd.f32 %v1064, 1.0
          %v1084 = vadd.f32 %v1066, 1.0
          %v1085 = vadd.f32 %v1068, 1.0
          %v1086 = vadd.f32 %v1070, 1.0
          %v1087 = vrcp.pop %v1071
          %v1088 = vmul.f32 1.0, %v1087
          %v1089 = vrcp.pop %v1072
          %v1090 = vmul.f32 1.0, %v1089
          %v1091 = vrcp.pop %v1073
          %v1092 = vmul.f32 1.0, %v1091
          %v1093 = vrcp.pop %v1074
          %v1094 = vmul.f32 1.0, %v1093
          %v1095 = vrcp.pop %v1075
          %v1096 = vmul.f32 1.0, %v1095
          %v1097 = vrcp.pop %v1076
          %v1098 = vmul.f32 1.0, %v1097
          %v1099 = vrcp.pop %v1077
          %v1100 = vmul.f32 1.0, %v1099
          %v1101 = vrcp.pop %v1078
          %v1102 = vmul.f32 1.0, %v1101
          %v1103 = vrcp.pop %v1079
          %v1104 = vmul.f32 1.0, %v1103
          %v1105 = vrcp.pop %v1080
          %v1106 = vmul.f32 1.0, %v1105
          %v1107 = vrcp.pop %v1081
          %v1108 = vmul.f32 1.0, %v1107
          %v1109 = vrcp.pop %v1082
          %v1110 = vmul.f32 1.0, %v1109
          %v1111 = vrcp.pop %v1083
          %v1112 = vmul.f32 1.0, %v1111
          %v1113 = vrcp.pop %v1084
          %v1114 = vmul.f32 1.0, %v1113
          %v1115 = vrcp.pop %v1085
          %v1116 = vmul.f32 1.0, %v1115
          %v1117 = vrcp.pop %v1086
          %v1118 = vmul.f32 1.0, %v1117
          %v1119 = vmul.f32 %v1088, %v899
          %v1120 = vmul.f32 %v1090, %v900
          %v1121 = vmul.f32 %v1092, %v901
          %v1122 = vmul.f32 %v1094, %v902
          %v1123 = vmul.f32 %v1096, %v903
          %v1124 = vmul.f32 %v1098, %v904
          %v1125 = vmul.f32 %v1100, %v905
          %v1126 = vmul.f32 %v1102, %v906
          %v1127 = vmul.f32 %v1104, %v907
          %v1128 = vmul.f32 %v1106, %v908
          %v1129 = vmul.f32 %v1108, %v909
          %v1130 = vmul.f32 %v1110, %v910
          %v1131 = vmul.f32 %v1112, %v911
          %v1132 = vmul.f32 %v1114, %v912
          %v1133 = vmul.f32 %v1116, %v913
          %v1134 = vmul.f32 %v1118, %v914
          %v1135 = vsub.f32 1.0, %v1088
          %v1136 = vsub.f32 1.0, %v1090
          %v1137 = vsub.f32 1.0, %v1092
          %v1138 = vsub.f32 1.0, %v1094
          %v1139 = vsub.f32 1.0, %v1096
          %v1140 = vsub.f32 1.0, %v1098
          %v1141 = vsub.f32 1.0, %v1100
          %v1142 = vsub.f32 1.0, %v1102
          %v1143 = vsub.f32 1.0, %v1104
          %v1144 = vsub.f32 1.0, %v1106
          %v1145 = vsub.f32 1.0, %v1108
          %v1146 = vsub.f32 1.0, %v1110
          %v1147 = vsub.f32 1.0, %v1112
          %v1148 = vsub.f32 1.0, %v1114
          %v1149 = vsub.f32 1.0, %v1116
          %v1150 = vsub.f32 1.0, %v1118
          %v1151 = vmul.f32 %v1135, %v771
          %v1152 = vmul.f32 %v1136, %v772
          %v1153 = vmul.f32 %v1137, %v773
          %v1154 = vmul.f32 %v1138, %v774
          %v1155 = vmul.f32 %v1139, %v775
          %v1156 = vmul.f32 %v1140, %v776
          %v1157 = vmul.f32 %v1141, %v777
          %v1158 = vmul.f32 %v1142, %v778
          %v1159 = vmul.f32 %v1143, %v779
          %v1160 = vmul.f32 %v1144, %v780
          %v1161 = vmul.f32 %v1145, %v781
          %v1162 = vmul.f32 %v1146, %v782
          %v1163 = vmul.f32 %v1147, %v783
          %v1164 = vmul.f32 %v1148, %v784
          %v1165 = vmul.f32 %v1149, %v785
          %v1166 = vmul.f32 %v1150, %v786
          %v1167 = vadd.f32 %v1119, %v1151
          %v1168 = vadd.f32 %v1120, %v1152
          %v1169 = vadd.f32 %v1121, %v1153
          %v1170 = vadd.f32 %v1122, %v1154
          %v1171 = vadd.f32 %v1123, %v1155
          %v1172 = vadd.f32 %v1124, %v1156
          %v1173 = vadd.f32 %v1125, %v1157
          %v1174 = vadd.f32 %v1126, %v1158
          %v1175 = vadd.f32 %v1127, %v1159
          %v1176 = vadd.f32 %v1128, %v1160
          %v1177 = vadd.f32 %v1129, %v1161
          %v1178 = vadd.f32 %v1130, %v1162
          %v1179 = vadd.f32 %v1131, %v1163
          %v1180 = vadd.f32 %v1132, %v1164
          %v1181 = vadd.f32 %v1133, %v1165
          %v1182 = vadd.f32 %v1134, %v1166
          %v1183 = vld [vmem:[#allocation10] sm:$0xff]
          %v1184 = vld [vmem:[#allocation10 + $0x8] sm:$0xff]
          %v1185 = vld [vmem:[#allocation10 + $0x10] sm:$0xff]
          %v1186 = vld [vmem:[#allocation10 + $0x18] sm:$0xff]
          %v1187 = vld [vmem:[#allocation10 + $0x20] sm:$0xff]
          %v1188 = vld [vmem:[#allocation10 + $0x28] sm:$0xff]
          %v1189 = vld [vmem:[#allocation10 + $0x30] sm:$0xff]
          %v1190 = vld [vmem:[#allocation10 + $0x38] sm:$0xff]
          %v1191 = vld [vmem:[#allocation10 + $0x40] sm:$0xff]
          %v1192 = vld [vmem:[#allocation10 + $0x48] sm:$0xff]
          %v1193 = vld [vmem:[#allocation10 + $0x50] sm:$0xff]
          %v1194 = vld [vmem:[#allocation10 + $0x58] sm:$0xff]
          %v1195 = vld [vmem:[#allocation10 + $0x60] sm:$0xff]
          %v1196 = vld [vmem:[#allocation10 + $0x68] sm:$0xff]
          %v1197 = vld [vmem:[#allocation10 + $0x70] sm:$0xff]
          %v1198 = vld [vmem:[#allocation10 + $0x78] sm:$0xff]
          %1199 = vmatprep.subr.mxu0 0.0
          %1200 = vmatpush1.msra.mxu0 %v1183
          %1201 = vmatprep.subr.mxu0 0.0
          %1202 = vmatpush1.msra.mxu0 %v1184
          %1203 = vmatprep.subr.mxu0 0.0
          %1204 = vmatpush1.msra.mxu0 %v1185
          %1205 = vmatprep.subr.mxu0 0.0
          %1206 = vmatpush1.msra.mxu0 %v1186
          %1207 = vmatprep.subr.mxu0 0.0
          %1208 = vmatpush1.msra.mxu0 %v1187
          %1209 = vmatprep.subr.mxu0 0.0
          %1210 = vmatpush1.msra.mxu0 %v1188
          %1211 = vmatprep.subr.mxu0 0.0
          %1212 = vmatpush1.msra.mxu0 %v1189
          %1213 = vmatprep.subr.mxu0 0.0
          %1214 = vmatpush1.msra.mxu0 %v1190
          %1215 = vmatprep.subr.mxu0 0.0
          %1216 = vmatpush1.msra.mxu0 %v1191
          %1217 = vmatprep.subr.mxu0 0.0
          %1218 = vmatpush1.msra.mxu0 %v1192
          %1219 = vmatprep.subr.mxu0 0.0
          %1220 = vmatpush1.msra.mxu0 %v1193
          %1221 = vmatprep.subr.mxu0 0.0
          %1222 = vmatpush1.msra.mxu0 %v1194
          %1223 = vmatprep.subr.mxu0 0.0
          %1224 = vmatpush1.msra.mxu0 %v1195
          %1225 = vmatprep.subr.mxu0 0.0
          %1226 = vmatpush1.msra.mxu0 %v1196
          %1227 = vmatprep.subr.mxu0 0.0
          %1228 = vmatpush1.msra.mxu0 %v1197
          %1229 = vmatprep.subr.mxu0 0.0
          %1230 = vmatpush1.msra.mxu0 %v1198
          %1231 = vmatprep.subr.mxu0 0.0
          %1232 = vmatpush1.msra.mxu0 0.0
          %1233 = vmatprep.subr.mxu0 0.0
          %1234 = vmatpush1.msra.mxu0 0.0
          %1235 = vmatprep.subr.mxu0 0.0
          %1236 = vmatpush1.msra.mxu0 0.0
          %1237 = vmatprep.subr.mxu0 0.0
          %1238 = vmatpush1.msra.mxu0 0.0
          %1239 = vmatprep.subr.mxu0 0.0
          %1240 = vmatpush1.msra.mxu0 0.0
          %1241 = vmatprep.subr.mxu0 0.0
          %1242 = vmatpush1.msra.mxu0 0.0
          %1243 = vmatprep.subr.mxu0 0.0
          %1244 = vmatpush1.msra.mxu0 0.0
          %1245 = vmatprep.subr.mxu0 0.0
          %1246 = vmatpush1.msra.mxu0 0.0
          %1247 = vmatprep.subr.mxu0 0.0
          %1248 = vmatpush1.msra.mxu0 0.0
          %1249 = vmatprep.subr.mxu0 0.0
          %1250 = vmatpush1.msra.mxu0 0.0
          %1251 = vmatprep.subr.mxu0 0.0
          %1252 = vmatpush1.msra.mxu0 0.0
          %1253 = vmatprep.subr.mxu0 0.0
          %1254 = vmatpush1.msra.mxu0 0.0
          %1255 = vmatprep.subr.mxu0 0.0
          %1256 = vmatpush1.msra.mxu0 0.0
          %1257 = vmatprep.subr.mxu0 0.0
          %1258 = vmatpush1.msra.mxu0 0.0
          %1259 = vmatprep.subr.mxu0 0.0
          %1260 = vmatpush1.msra.mxu0 0.0
          %1261 = vmatprep.subr.mxu0 0.0
          %1262 = vmatpush1.msra.mxu0 0.0
          %1263 = vmatprep.mubr.f32.mxu0 0.0
          %1264 = vmatmul.mubr.f32.gmra.mrb[0].mxu0 %v1167
          %v1265 = vpop.f32.mrb[0].mxu0
          %v1266 = vadd.f32 0.0, %v1265
          %v1267 = vpop.f32.mrb[0].mxu0
          %1268 = vmatprep.mubr.f32.mxu0 0.0
          %1269 = vmatmul.mubr.f32.gmra.mrb[0].mxu0 %v1168
          %v1270 = vpop.f32.mrb[0].mxu0
          %v1271 = vadd.f32 0.0, %v1270
          %v1272 = vpop.f32.mrb[0].mxu0
          %1273 = vmatprep.mubr.f32.mxu0 0.0
          %1274 = vmatmul.mubr.f32.gmra.mrb[0].mxu0 %v1169
          %v1275 = vpop.f32.mrb[0].mxu0
          %v1276 = vadd.f32 0.0, %v1275
          %v1277 = vpop.f32.mrb[0].mxu0
          %1278 = vmatprep.mubr.f32.mxu0 0.0
          %1279 = vmatmul.mubr.f32.gmra.mrb[0].mxu0 %v1170
          %v1280 = vpop.f32.mrb[0].mxu0
          %v1281 = vadd.f32 0.0, %v1280
          %v1282 = vpop.f32.mrb[0].mxu0
          %1283 = vmatprep.mubr.f32.mxu0 0.0
          %1284 = vmatmul.mubr.f32.gmra.mrb[0].mxu0 %v1171
          %v1285 = vpop.f32.mrb[0].mxu0
          %v1286 = vadd.f32 0.0, %v1285
          %v1287 = vpop.f32.mrb[0].mxu0
          %1288 = vmatprep.mubr.f32.mxu0 0.0
          %1289 = vmatmul.mubr.f32.gmra.mrb[0].mxu0 %v1172
          %v1290 = vpop.f32.mrb[0].mxu0
          %v1291 = vadd.f32 0.0, %v1290
          %v1292 = vpop.f32.mrb[0].mxu0
          %1293 = vmatprep.mubr.f32.mxu0 0.0
          %1294 = vmatmul.mubr.f32.gmra.mrb[0].mxu0 %v1173
          %v1295 = vpop.f32.mrb[0].mxu0
          %v1296 = vadd.f32 0.0, %v1295
          %v1297 = vpop.f32.mrb[0].mxu0
          %1298 = vmatprep.mubr.f32.mxu0 0.0
          %1299 = vmatmul.mubr.f32.gmra.mrb[0].mxu0 %v1174
          %v1300 = vpop.f32.mrb[0].mxu0
          %v1301 = vadd.f32 0.0, %v1300
          %v1302 = vpop.f32.mrb[0].mxu0
          %1303 = vmatprep.mubr.f32.mxu0 0.0
          %1304 = vmatmul.mubr.f32.gmra.mrb[0].mxu0 %v1175
          %v1305 = vpop.f32.mrb[0].mxu0
          %v1306 = vadd.f32 0.0, %v1305
          %v1307 = vpop.f32.mrb[0].mxu0
          %1308 = vmatprep.mubr.f32.mxu0 0.0
          %1309 = vmatmul.mubr.f32.gmra.mrb[0].mxu0 %v1176
          %v1310 = vpop.f32.mrb[0].mxu0
          %v1311 = vadd.f32 0.0, %v1310
          %v1312 = vpop.f32.mrb[0].mxu0
          %1313 = vmatprep.mubr.f32.mxu0 0.0
          %1314 = vmatmul.mubr.f32.gmra.mrb[0].mxu0 %v1177
          %v1315 = vpop.f32.mrb[0].mxu0
          %v1316 = vadd.f32 0.0, %v1315
          %v1317 = vpop.f32.mrb[0].mxu0
          %1318 = vmatprep.mubr.f32.mxu0 0.0
          %1319 = vmatmul.mubr.f32.gmra.mrb[0].mxu0 %v1178
          %v1320 = vpop.f32.mrb[0].mxu0
          %v1321 = vadd.f32 0.0, %v1320
          %v1322 = vpop.f32.mrb[0].mxu0
          %1323 = vmatprep.mubr.f32.mxu0 0.0
          %1324 = vmatmul.mubr.f32.gmra.mrb[0].mxu0 %v1179
          %v1325 = vpop.f32.mrb[0].mxu0
          %v1326 = vadd.f32 0.0, %v1325
          %v1327 = vpop.f32.mrb[0].mxu0
          %1328 = vmatprep.mubr.f32.mxu0 0.0
          %1329 = vmatmul.mubr.f32.gmra.mrb[0].mxu0 %v1180
          %v1330 = vpop.f32.mrb[0].mxu0
          %v1331 = vadd.f32 0.0, %v1330
          %v1332 = vpop.f32.mrb[0].mxu0
          %1333 = vmatprep.mubr.f32.mxu0 0.0
          %1334 = vmatmul.mubr.f32.gmra.mrb[0].mxu0 %v1181
          %v1335 = vpop.f32.mrb[0].mxu0
          %v1336 = vadd.f32 0.0, %v1335
          %v1337 = vpop.f32.mrb[0].mxu0
          %1338 = vmatprep.mubr.f32.mxu0 0.0
          %1339 = vmatmul.mubr.f32.gmra.mrb[0].mxu0 %v1182
          %v1340 = vpop.f32.mrb[0].mxu0
          %v1341 = vadd.f32 0.0, %v1340
          %v1342 = vpop.f32.mrb[0].mxu0
          %1343 = vdwg.mxu0
          %v1344 = vmax.f32 %v1266, 0.0
          %v1345 = vmax.f32 %v1271, 0.0
          %v1346 = vmax.f32 %v1276, 0.0
          %v1347 = vmax.f32 %v1281, 0.0
          %v1348 = vmax.f32 %v1286, 0.0
          %v1349 = vmax.f32 %v1291, 0.0
          %v1350 = vmax.f32 %v1296, 0.0
          %v1351 = vmax.f32 %v1301, 0.0
          %v1352 = vmax.f32 %v1306, 0.0
          %v1353 = vmax.f32 %v1311, 0.0
          %v1354 = vmax.f32 %v1316, 0.0
          %v1355 = vmax.f32 %v1321, 0.0
          %v1356 = vmax.f32 %v1326, 0.0
          %v1357 = vmax.f32 %v1331, 0.0
          %v1358 = vmax.f32 %v1336, 0.0
          %v1359 = vmax.f32 %v1341, 0.0
          %1360 = vst [vmem:[%s438] sm:$0xff] %v1344
          %1361 = vst [vmem:[%s438 + $0x8] sm:$0xff] %v1345
          %1362 = vst [vmem:[%s438 + $0x10] sm:$0xff] %v1346
          %1363 = vst [vmem:[%s438 + $0x18] sm:$0xff] %v1347
          %1364 = vst [vmem:[%s438 + $0x20] sm:$0xff] %v1348
          %1365 = vst [vmem:[%s438 + $0x28] sm:$0xff] %v1349
          %1366 = vst [vmem:[%s438 + $0x30] sm:$0xff] %v1350
          %1367 = vst [vmem:[%s438 + $0x38] sm:$0xff] %v1351
          %1368 = vst [vmem:[%s438 + $0x40] sm:$0xff] %v1352
          %1369 = vst [vmem:[%s438 + $0x48] sm:$0xff] %v1353
          %1370 = vst [vmem:[%s438 + $0x50] sm:$0xff] %v1354
          %1371 = vst [vmem:[%s438 + $0x58] sm:$0xff] %v1355
          %1372 = vst [vmem:[%s438 + $0x60] sm:$0xff] %v1356
          %1373 = vst [vmem:[%s438 + $0x68] sm:$0xff] %v1357
          %1374 = vst [vmem:[%s438 + $0x70] sm:$0xff] %v1358
          %1375 = vst [vmem:[%s438 + $0x78] sm:$0xff] %v1359
        $region91: #{tpu_custom_call.1} parent=66 // pred_fallthru
          _
        %s1376 = sand.u32 %s217, 1
        %s1377 = scalar_lea.sflag [#allocation7], %s1376
        %s1378 = sand.u32 %s217, 1
        %s1379 = smul.addr %s1378, 128
        %s1380 = scalar_lea.vmem [#allocation11], %s1379
        // Predicated region
        $region92: #{tpu_custom_call.1} parent=66 // pred_check
          %p1381 = pneg %p227
        $region93: #{tpu_custom_call.1} parent=66 // pred_check_branch
          %1383 = sbr.rel (%p1381) target = $region95
        $region94: #{tpu_custom_call.1} parent=66 // pred_region
          %s1384 = smul.u32 16, %s32
          %s1386 = ssub.s32 2048, 2048
          %1387 = vsyncadd %s1377, %s1386
          %s1388 = smul.addr %s1384, 128
          %s1389 = scalar_lea.hbm %s7, %s1388
          %s1390 = sshll.u32 %s1380, 4
          %s1391 = int_to_ptr.vmem [resolvable:$true] %s1390
          %1396 = dma.vmem_to_hbm [thread:$0]  %s1391, 2048, %s1389, %s1377, 128, 128, 8
        $region95: #{tpu_custom_call.1} parent=66 // pred_fallthru
          _
      $region67: #{tpu_custom_call.1} parent=5 // pred_fallthru
        _
      %p1397 = scmp.le.s32.totalorder 2, %s23
      // Predicated region
      $region96: #{tpu_custom_call.1} parent=5 // pred_check
        %p1398 = pneg %p1397
      $region97: #{tpu_custom_call.1} parent=5 // pred_check_branch
        %1400 = sbr.rel (%p1398) target = $region99
      $region98: #{tpu_custom_call.1} parent=5 // pred_region
        %s1401 = ssub.s32 %s23, 2
        // Predicated region
        $region100: #{tpu_custom_call.1} parent=98 // pred_check
          %p1402 = pneg %p233
        $region101: #{tpu_custom_call.1} parent=98 // pred_check_branch
          %1404 = sbr.rel (%p1402) target = $region103
        $region102: #{tpu_custom_call.1} parent=98 // pred_region
          %s1405 = sand.u32 %s218, 1
          %s1406 = scalar_lea.sflag [#allocation7], %s1405
          %s1407 = sand.u32 %s218, 1
          %s1408 = smul.addr %s1407, 128
          %s1409 = scalar_lea.vmem [#allocation11], %s1408
          %1410 = dma.done %s1406, 2048
        $region103: #{tpu_custom_call.1} parent=98 // pred_fallthru
          _
      $region99: #{tpu_custom_call.1} parent=5 // pred_fallthru
        _
    $region6: #{tpu_custom_call.1} parent=1 // loop_footer
      %s27 = sadd.s32 1, %s23
    $region7: #{tpu_custom_call.1} parent=1 // loop_footer_branch
      %22 = sbr.rel target = $region3
    $region8: #{tpu_custom_call.1} parent=1 // loop_exit
      _
    %1411 = vsyncpa [#allocation6], 1
    %s1412 = scalar_lea.sflag [#allocation6], 1
    %1413 = vsyncpa %s1412, 1
    %1414 = vsyncpa [#allocation9], 1
    %s1415 = scalar_lea.sflag [#allocation9], 1
    %1416 = vsyncpa %s1415, 1
    %1417 = vsyncpa [#allocation7], 1
    %s1418 = scalar_lea.sflag [#allocation7], 1
    %1419 = vsyncpa %s1418, 1

</llo_original>
